<compile_context>
chip_gen: v7x
topology: tpu7x:2x2x1
jax: 0.10.0
libtpu: 0.0.40
codegen_flags: <defaults>
</compile_context>

<pallas_src>
import jax
import jax.numpy as jnp
from jax.experimental import pallas as pl
from jax.experimental.pallas import tpu as pltpu


# ----------------- Kernel A: BN1(affine) + ReLU + 1x1 conv + BN2 partial stats ---------------
def _conv1_bn_stats_kernel(x_ref, s1_ref, b1_ref, w1_ref, y_ref, ysum_ref, ysq_ref):
    # x_ref : (1, Cin, HW)   channel-major input image
    # s1/b1 : (Cin, 1)       BN1 folded scale / shift
    # w1    : (Cmid, Cin)    1x1 conv weight (transposed -> lane-dense output)
    # y_ref : (1, Cmid, HW)  conv1 output, HW on lanes
    # ysum/ysq : (Cmid, 1)   running per-channel sum / sum-of-squares (BN2 stats)
    n = pl.program_id(0)

    a = jnp.maximum(x_ref[0] * s1_ref[...] + b1_ref[...], 0.0)          # f32 elementwise (v5e-safe)
    y = jnp.dot(w1_ref[...].astype(jnp.bfloat16), a.astype(jnp.bfloat16),
                preferred_element_type=jnp.float32)                      # (Cmid, HW), f32 acc
    y_ref[0] = y

    @pl.when(n == 0)
    def _():
        ysum_ref[...] = jnp.zeros_like(ysum_ref)
        ysq_ref[...] = jnp.zeros_like(ysq_ref)

    ysum_ref[...] += jnp.sum(y, axis=-1, keepdims=True)
    ysq_ref[...] += jnp.sum(y * y, axis=-1, keepdims=True)


def conv1_bn_relu_with_stats(x_cm, scale1, shift1, w1):
    N, Cin, HW = x_cm.shape
    Cmid = w1.shape[0]
    return pl.pallas_call(
        _conv1_bn_stats_kernel,
        out_shape=(
            jax.ShapeDtypeStruct((N, Cmid, HW), jnp.float32),
            jax.ShapeDtypeStruct((Cmid, 1), jnp.float32),
            jax.ShapeDtypeStruct((Cmid, 1), jnp.float32),
        ),
        grid=(N,),
        in_specs=[
            pl.BlockSpec((1, Cin, HW), lambda n: (n, 0, 0)),
            pl.BlockSpec((Cin, 1), lambda n: (0, 0)),
            pl.BlockSpec((Cin, 1), lambda n: (0, 0)),
            pl.BlockSpec((Cmid, Cin), lambda n: (0, 0)),
        ],
        out_specs=(
            pl.BlockSpec((1, Cmid, HW), lambda n: (n, 0, 0)),
            pl.BlockSpec((Cmid, 1), lambda n: (0, 0)),   # accumulated across grid
            pl.BlockSpec((Cmid, 1), lambda n: (0, 0)),   # accumulated across grid
        ),
        # stats outputs accumulate across the grid axis -> must be "arbitrary"
        compiler_params=pltpu.CompilerParams(dimension_semantics=("arbitrary",)),
    )(x_cm, scale1, shift1, w1)


# --------- Kernel B: BN2(affine) + ReLU + logical pad + 3x3 conv + fused channel concat -------
def _make_conv2_kernel(H, W, G, Cmid, Cin):
    HW = H * W
    PAD = W + 1   # enough lane padding for any tap shift |dy*W + dx| <= W+1

    def kernel(y_ref, x_ref, s2_ref, b2_ref, w2_ref, o_ref):
        # y_ref : (1, Cmid, HW)    conv1 output (channel-major)
        # x_ref : (1, Cin,  HW)    original input (for the fused concat writeback)
        # s2/b2 : (Cmid, 1)        BN2 folded scale / shift
        # w2    : (3, G, 3*Cmid)   3x3 weight, indexed [kh, g, kw*Cmid + c]
        # o_ref : (1, G+Cin, HW)   fused torch.cat([conv2_out, x], dim=1)
        z = jnp.maximum(y_ref[0] * s2_ref[...] + b2_ref[...], 0.0)       # (Cmid, HW) f32

        # Logical zero padding along the flattened HW (lane) axis. relu happens BEFORE the
        # pad, so the halo is truly zero (relu(0*scale+shift) != 0, cannot pre-pad in HBM).
        # Row (h) overflow lands in the zero pad; column (w) wrap is killed by the lane mask.
        zeros = jnp.zeros((Cmid, PAD), jnp.float32)
        zp = jnp.concatenate([zeros, z, zeros], axis=1)                  # (Cmid, HW + 2*PAD)

        lane = jax.lax.broadcasted_iota(jnp.int32, (1, HW), 1)
        w_pos = lane % W                                                 # output-pixel column

        wt = w2_ref[...].astype(jnp.bfloat16)                            # (3, G, 3*Cmid)
        acc = jnp.zeros((G, HW), jnp.float32)
        for dy in range(3):                                              # kernel row (kh)
            pieces = []
            for dx in range(3):                                          # kernel col (kw)
                k = (dy - 1) * W + (dx - 1)                              # flat source shift
                shifted = zp[:, PAD + k:PAD + k + HW]                    # (Cmid, HW), lane shift
                if dx == 0:
                    shifted = jnp.where(w_pos >= 1, shifted, 0.0)
                elif dx == 2:
                    shifted = jnp.where(w_pos <= W - 2, shifted, 0.0)
                pieces.append(shifted)
            patch = jnp.concatenate(pieces, axis=0).astype(jnp.bfloat16)  # (3*Cmid, HW)
            acc = acc + jnp.dot(wt[dy], patch,                            # (G, HW), lane-dense
                                preferred_element_type=jnp.float32)

        # Fused channel concat: [conv2 output ; original x] -> NCHW-ready output block.
        o_ref[:, 0:G, :] = acc[None].astype(o_ref.dtype)
        o_ref[:, G:G + Cin, :] = x_ref[...].astype(o_ref.dtype)

    return kernel


def conv2_bn_relu_concat(y_cm, x_cm, scale2, shift2, w2_r, H, W):
    N, Cmid, HW = y_cm.shape
    Cin = x_cm.shape[1]
    G = w2_r.shape[1]
    kernel = _make_conv2_kernel(H, W, G, Cmid, Cin)
    return pl.pallas_call(
        kernel,
        out_shape=jax.ShapeDtypeStruct((N, G + Cin, HW), jnp.float32),
        grid=(N,),
        in_specs=[
            pl.BlockSpec((1, Cmid, HW), lambda n: (n, 0, 0)),
            pl.BlockSpec((1, Cin, HW), lambda n: (n, 0, 0)),
            pl.BlockSpec((Cmid, 1), lambda n: (0, 0)),
            pl.BlockSpec((Cmid, 1), lambda n: (0, 0)),
            pl.BlockSpec((3, G, 3 * Cmid), lambda n: (0, 0, 0)),
        ],
        out_specs=pl.BlockSpec((1, G + Cin, HW), lambda n: (n, 0, 0)),
        compiler_params=pltpu.CompilerParams(dimension_semantics=("parallel",)),
    )(y_cm, x_cm, scale2, shift2, w2_r)


# ------------------------------------ Bottleneck forward -------------------------------------
def bottleneck_forward(x_nchw, params, eps=1e-5):
    N, Cin, H, W = x_nchw.shape
    HW = H * W
    Cmid = params["w1"].shape[0]
    G = params["w2"].shape[0]

    x_cm = x_nchw.reshape(N, Cin, HW)   # free reshape; stays channel-major, no transpose

    # BN1 training-mode batch statistics (unavoidable first pass over x; tiny XLA reduction).
    mean1 = jnp.mean(x_cm, axis=(0, 2))
    var1 = jnp.var(x_cm, axis=(0, 2))                     # biased, like torch train-mode norm
    inv1 = params["g1"] / jnp.sqrt(var1 + eps)
    scale1 = inv1.reshape(Cin, 1)
    shift1 = (params["b1"] - mean1 * inv1).reshape(Cin, 1)

    # Kernel A: BN1+ReLU+conv1x1, emits BN2 partial moments.
    y_cm, ysum, ysq = conv1_bn_relu_with_stats(x_cm, scale1, shift1, params["w1"])

    # Finish BN2 stats from the in-kernel partial sums (no HBM re-read of y).
    m = float(N * HW)
    mean2 = ysum[:, 0] / m
    var2 = jnp.maximum(ysq[:, 0] / m - mean2 * mean2, 0.0)
    inv2 = params["g2"] / jnp.sqrt(var2 + eps)
    scale2 = inv2.reshape(Cmid, 1)
    shift2 = (params["b2"] - mean2 * inv2).reshape(Cmid, 1)

    # 3x3 weight: PyTorch (G, Cmid, 3, 3) -> (3_kh, G, 3_kw * Cmid); tiny, done once.
    w2_r = jnp.transpose(params["w2"], (2, 0, 3, 1)).reshape(3, G, 3 * Cmid)

    # Kernel B: BN2+ReLU+pad+conv3x3 with the channel concat fused into the output.
    out_full = conv2_bn_relu_concat(y_cm, x_cm, scale2, shift2, w2_r, H, W)  # (N, G+Cin, HW)
    return out_full.reshape(N, G + Cin, H, W)


# ------------------------------------- pure-JAX reference ------------------------------------
def bottleneck_reference(x, params, eps=1e-5):
    mean1 = x.mean(axis=(0, 2, 3))
    var1 = x.var(axis=(0, 2, 3))
    xh = (x - mean1[None, :, None, None]) / jnp.sqrt(var1 + eps)[None, :, None, None]
    xh = xh * params["g1"][None, :, None, None] + params["b1"][None, :, None, None]
    a = jnp.maximum(xh, 0.0)
    y = jnp.einsum("oc,nchw->nohw", params["w1"], a)
    mean2 = y.mean(axis=(0, 2, 3))
    var2 = y.var(axis=(0, 2, 3))
    yh = (y - mean2[None, :, None, None]) / jnp.sqrt(var2 + eps)[None, :, None, None]
    yh = yh * params["g2"][None, :, None, None] + params["b2"][None, :, None, None]
    z = jnp.maximum(yh, 0.0)
    out = jax.lax.conv_general_dilated(z, params["w2"], (1, 1), "SAME",
                                       dimension_numbers=("NCHW", "OIHW", "NCHW"))
    return jnp.concatenate([out, x], axis=1)


if __name__ == "__main__":
    in_planes, growth_rate = 4, 8
    Cmid = 4 * growth_rate
    N, H, W = 2, 16, 16

    key = jax.random.PRNGKey(0)
    k = jax.random.split(key, 7)
    params = {
        "g1": jax.random.uniform(k[0], (in_planes,), jnp.float32, 0.5, 1.5),
        "b1": jax.random.normal(k[1], (in_planes,), jnp.float32) * 0.1,
        # conv1 weight: PyTorch (Cmid, Cin, 1, 1) squeezed to (Cmid, Cin)
        "w1": jax.random.normal(k[2], (Cmid, in_planes), jnp.float32) / jnp.sqrt(float(in_planes)),
        "g2": jax.random.uniform(k[3], (Cmid,), jnp.float32, 0.5, 1.5),
        "b2": jax.random.normal(k[4], (Cmid,), jnp.float32) * 0.1,
        # conv2 weight: PyTorch layout (G, Cmid, 3, 3)
        "w2": jax.random.normal(k[5], (growth_rate, Cmid, 3, 3), jnp.float32)
              / jnp.sqrt(float(9 * Cmid)),
    }
    x = jax.random.normal(k[6], (N, in_planes, H, W), jnp.float32)

    out = jax.jit(bottleneck_forward)(x, params)
    jax.block_until_ready(out)
    assert out.shape == (N, growth_rate + in_planes, H, W), out.shape

    ref = bottleneck_reference(x, params)
    max_err = float(jnp.max(jnp.abs(out - ref)))
    assert max_err < 0.15, f"max abs error {max_err}"   # loose tolerance: bf16 MXU inputs
    print("KERNEL_OK")
</pallas_src>

<mosaic_0001>
module attributes {stable_mosaic.version = 11 : i64} {
  func.func @_conv1_bn_stats_kernel(%arg0: i32, %arg1: memref<1x4x256xf32, #tpu.memory_space<vmem>>, %arg2: memref<4x1xf32, #tpu.memory_space<vmem>>, %arg3: memref<4x1xf32, #tpu.memory_space<vmem>>, %arg4: memref<32x4xf32, #tpu.memory_space<vmem>>, %arg5: memref<1x32x256xf32, #tpu.memory_space<vmem>>, %arg6: memref<32x1xf32, #tpu.memory_space<vmem>>, %arg7: memref<32x1xf32, #tpu.memory_space<vmem>>) attributes {dimension_semantics = [#tpu.dimension_semantics<arbitrary>], iteration_bounds = array<i64: 2>, scalar_prefetch = 0 : i64, scratch_operands = 0 : i64, tpu.core_type = #tpu.core_type<tc>, window_params = [{transform_indices = @transform_0, window_bounds = array<i64: 1, 4, 256>}, {pipeline_mode = #tpu.pipeline_mode<synchronous>, transform_indices = @transform_1, window_bounds = array<i64: 4, 1>}, {pipeline_mode = #tpu.pipeline_mode<synchronous>, transform_indices = @transform_2, window_bounds = array<i64: 4, 1>}, {pipeline_mode = #tpu.pipeline_mode<synchronous>, transform_indices = @transform_3, window_bounds = array<i64: 32, 4>}, {transform_indices = @transform_4, window_bounds = array<i64: 1, 32, 256>}, {pipeline_mode = #tpu.pipeline_mode<synchronous>, transform_indices = @transform_5, window_bounds = array<i64: 32, 1>}, {pipeline_mode = #tpu.pipeline_mode<synchronous>, transform_indices = @transform_6, window_bounds = array<i64: 32, 1>}]} {
    %c0 = arith.constant 0 : index
    %c0_0 = arith.constant 0 : index
    %c0_1 = arith.constant 0 : index
    %0 = vector.load %arg1[%c0, %c0_0, %c0_1] : memref<1x4x256xf32, #tpu.memory_space<vmem>>, vector<1x4x256xf32>
    %1 = vector.shape_cast %0 : vector<1x4x256xf32> to vector<4x256xf32>
    %c0_2 = arith.constant 0 : index
    %c0_3 = arith.constant 0 : index
    %2 = vector.load %arg2[%c0_2, %c0_3] : memref<4x1xf32, #tpu.memory_space<vmem>>, vector<4x1xf32>
    %3 = vector.broadcast %2 : vector<4x1xf32> to vector<4x256xf32>
    %4 = arith.mulf %1, %3 : vector<4x256xf32>
    %c0_4 = arith.constant 0 : index
    %c0_5 = arith.constant 0 : index
    %5 = vector.load %arg3[%c0_4, %c0_5] : memref<4x1xf32, #tpu.memory_space<vmem>>, vector<4x1xf32>
    %6 = vector.broadcast %5 : vector<4x1xf32> to vector<4x256xf32>
    %7 = arith.addf %4, %6 : vector<4x256xf32>
    %cst = arith.constant 0.000000e+00 : f32
    %8 = vector.broadcast %cst : f32 to vector<4x256xf32>
    %9 = arith.maximumf %7, %8 : vector<4x256xf32>
    %c0_6 = arith.constant 0 : index
    %c0_7 = arith.constant 0 : index
    %10 = vector.load %arg4[%c0_6, %c0_7] : memref<32x4xf32, #tpu.memory_space<vmem>>, vector<32x4xf32>
    %11 = arith.truncf %10 : vector<32x4xf32> to vector<32x4xbf16>
    %12 = arith.truncf %9 : vector<4x256xf32> to vector<4x256xbf16>
    %cst_8 = arith.constant dense<0.000000e+00> : vector<32x256xf32>
    %13 = tpu.matmul %11, %12, %cst_8 {dimension_numbers = #tpu.dot_dimension_numbers<[1], [0], [0], [1], [0, 0, 1, 1], [], []>} : vector<32x4xbf16>, vector<4x256xbf16>, vector<32x256xf32> -> vector<32x256xf32>
    %c0_9 = arith.constant 0 : index
    %c0_10 = arith.constant 0 : index
    %c0_11 = arith.constant 0 : index
    %14 = vector.load %arg5[%c0_9, %c0_10, %c0_11] : memref<1x32x256xf32, #tpu.memory_space<vmem>>, vector<1x32x256xf32>
    %15 = vector.shape_cast %14 : vector<1x32x256xf32> to vector<32x256xf32>
    %16 = vector.shape_cast %13 : vector<32x256xf32> to vector<1x32x256xf32>
    tpu.vector_store %arg5[%c0_9, %c0_10, %c0_11], %16 {strides = array<i32>} : memref<1x32x256xf32, #tpu.memory_space<vmem>>, vector<1x32x256xf32>,
    %c0_i32 = arith.constant 0 : i32
    %17 = arith.cmpi eq, %arg0, %c0_i32 : i32
    %18 = arith.extui %17 : i1 to i32
    %c0_i32_12 = arith.constant 0 : i32
    %19 = arith.cmpi ne, %18, %c0_i32_12 : i32
    scf.if %19 {
      %cst_23 = arith.constant 0.000000e+00 : f32
      %31 = vector.broadcast %cst_23 : f32 to vector<32x1xf32>
      %c0_24 = arith.constant 0 : index
      %c0_25 = arith.constant 0 : index
      %32 = vector.load %arg6[%c0_24, %c0_25] : memref<32x1xf32, #tpu.memory_space<vmem>>, vector<32x1xf32>
      tpu.vector_store %arg6[%c0_24, %c0_25], %31 {strides = array<i32>} : memref<32x1xf32, #tpu.memory_space<vmem>>, vector<32x1xf32>,
      %cst_26 = arith.constant 0.000000e+00 : f32
      %33 = vector.broadcast %cst_26 : f32 to vector<32x1xf32>
      %c0_27 = arith.constant 0 : index
      %c0_28 = arith.constant 0 : index
      %34 = vector.load %arg7[%c0_27, %c0_28] : memref<32x1xf32, #tpu.memory_space<vmem>>, vector<32x1xf32>
      tpu.vector_store %arg7[%c0_27, %c0_28], %33 {strides = array<i32>} : memref<32x1xf32, #tpu.memory_space<vmem>>, vector<32x1xf32>,
    } else {
    }
    %c0_13 = arith.constant 0 : index
    %c0_14 = arith.constant 0 : index
    %20 = vector.load %arg6[%c0_13, %c0_14] : memref<32x1xf32, #tpu.memory_space<vmem>>, vector<32x1xf32>
    %cst_15 = arith.constant dense<0.000000e+00> : vector<32xf32>
    %21 = vector.multi_reduction <add>, %13, %cst_15 [1] : vector<32x256xf32> to vector<32xf32>
    %22 = vector.shape_cast %21 : vector<32xf32> to vector<32x1xf32>
    %23 = arith.addf %20, %22 : vector<32x1xf32>
    %c0_16 = arith.constant 0 : index
    %c0_17 = arith.constant 0 : index
    %24 = vector.load %arg6[%c0_16, %c0_17] : memref<32x1xf32, #tpu.memory_space<vmem>>, vector<32x1xf32>
    tpu.vector_store %arg6[%c0_16, %c0_17], %23 {strides = array<i32>} : memref<32x1xf32, #tpu.memory_space<vmem>>, vector<32x1xf32>,
    %c0_18 = arith.constant 0 : index
    %c0_19 = arith.constant 0 : index
    %25 = vector.load %arg7[%c0_18, %c0_19] : memref<32x1xf32, #tpu.memory_space<vmem>>, vector<32x1xf32>
    %26 = arith.mulf %13, %13 : vector<32x256xf32>
    %cst_20 = arith.constant dense<0.000000e+00> : vector<32xf32>
    %27 = vector.multi_reduction <add>, %26, %cst_20 [1] : vector<32x256xf32> to vector<32xf32>
    %28 = vector.shape_cast %27 : vector<32xf32> to vector<32x1xf32>
    %29 = arith.addf %25, %28 : vector<32x1xf32>
    %c0_21 = arith.constant 0 : index
    %c0_22 = arith.constant 0 : index
    %30 = vector.load %arg7[%c0_21, %c0_22] : memref<32x1xf32, #tpu.memory_space<vmem>>, vector<32x1xf32>
    tpu.vector_store %arg7[%c0_21, %c0_22], %29 {strides = array<i32>} : memref<32x1xf32, #tpu.memory_space<vmem>>, vector<32x1xf32>,
    return
  }
  func.func @transform_0(%arg0: i32) -> (i32, i32, i32) {
    %c0_i32 = arith.constant 0 : i32
    %c0_i32_0 = arith.constant 0 : i32
    %c0_i32_1 = arith.constant 0 : i32
    return %arg0, %c0_i32, %c0_i32_0 : i32, i32, i32
  }
  func.func @transform_1(%arg0: i32) -> (i32, i32) {
    %c0_i32 = arith.constant 0 : i32
    %c0_i32_0 = arith.constant 0 : i32
    %c0_i32_1 = arith.constant 0 : i32
    return %c0_i32, %c0_i32_0 : i32, i32
  }
  func.func @transform_2(%arg0: i32) -> (i32, i32) {
    %c0_i32 = arith.constant 0 : i32
    %c0_i32_0 = arith.constant 0 : i32
    %c0_i32_1 = arith.constant 0 : i32
    return %c0_i32, %c0_i32_0 : i32, i32
  }
  func.func @transform_3(%arg0: i32) -> (i32, i32) {
    %c0_i32 = arith.constant 0 : i32
    %c0_i32_0 = arith.constant 0 : i32
    %c0_i32_1 = arith.constant 0 : i32
    return %c0_i32, %c0_i32_0 : i32, i32
  }
  func.func @transform_4(%arg0: i32) -> (i32, i32, i32) {
    %c0_i32 = arith.constant 0 : i32
    %c0_i32_0 = arith.constant 0 : i32
    %c0_i32_1 = arith.constant 0 : i32
    return %arg0, %c0_i32, %c0_i32_0 : i32, i32, i32
  }
  func.func @transform_5(%arg0: i32) -> (i32, i32) {
    %c0_i32 = arith.constant 0 : i32
    %c0_i32_0 = arith.constant 0 : i32
    %c0_i32_1 = arith.constant 0 : i32
    return %c0_i32, %c0_i32_0 : i32, i32
  }
  func.func @transform_6(%arg0: i32) -> (i32, i32) {
    %c0_i32 = arith.constant 0 : i32
    %c0_i32_0 = arith.constant 0 : i32
    %c0_i32_1 = arith.constant 0 : i32
    return %c0_i32, %c0_i32_0 : i32, i32
  }
}

module attributes {stable_mosaic.version = 11 : i64} {
  func.func @kernel(%arg0: i32, %arg1: memref<1x32x256xf32, #tpu.memory_space<vmem>>, %arg2: memref<1x4x256xf32, #tpu.memory_space<vmem>>, %arg3: memref<32x1xf32, #tpu.memory_space<vmem>>, %arg4: memref<32x1xf32, #tpu.memory_space<vmem>>, %arg5: memref<3x8x96xf32, #tpu.memory_space<vmem>>, %arg6: memref<1x12x256xf32, #tpu.memory_space<vmem>>) attributes {dimension_semantics = [#tpu.dimension_semantics<parallel>], iteration_bounds = array<i64: 2>, scalar_prefetch = 0 : i64, scratch_operands = 0 : i64, tpu.core_type = #tpu.core_type<tc>, window_params = [{transform_indices = @transform_0, window_bounds = array<i64: 1, 32, 256>}, {transform_indices = @transform_1, window_bounds = array<i64: 1, 4, 256>}, {pipeline_mode = #tpu.pipeline_mode<synchronous>, transform_indices = @transform_2, window_bounds = array<i64: 32, 1>}, {pipeline_mode = #tpu.pipeline_mode<synchronous>, transform_indices = @transform_3, window_bounds = array<i64: 32, 1>}, {pipeline_mode = #tpu.pipeline_mode<synchronous>, transform_indices = @transform_4, window_bounds = array<i64: 3, 8, 96>}, {transform_indices = @transform_5, window_bounds = array<i64: 1, 12, 256>}]} {
    %c0 = arith.constant 0 : index
    %c0_0 = arith.constant 0 : index
    %c0_1 = arith.constant 0 : index
    %0 = vector.load %arg1[%c0, %c0_0, %c0_1] : memref<1x32x256xf32, #tpu.memory_space<vmem>>, vector<1x32x256xf32>
    %1 = vector.shape_cast %0 : vector<1x32x256xf32> to vector<32x256xf32>
    %c0_2 = arith.constant 0 : index
    %c0_3 = arith.constant 0 : index
    %2 = vector.load %arg3[%c0_2, %c0_3] : memref<32x1xf32, #tpu.memory_space<vmem>>, vector<32x1xf32>
    %3 = vector.broadcast %2 : vector<32x1xf32> to vector<32x256xf32>
    %4 = arith.mulf %1, %3 : vector<32x256xf32>
    %c0_4 = arith.constant 0 : index
    %c0_5 = arith.constant 0 : index
    %5 = vector.load %arg4[%c0_4, %c0_5] : memref<32x1xf32, #tpu.memory_space<vmem>>, vector<32x1xf32>
    %6 = vector.broadcast %5 : vector<32x1xf32> to vector<32x256xf32>
    %7 = arith.addf %4, %6 : vector<32x256xf32>
    %cst = arith.constant 0.000000e+00 : f32
    %8 = vector.broadcast %cst : f32 to vector<32x256xf32>
    %9 = arith.maximumf %7, %8 : vector<32x256xf32>
    %cst_6 = arith.constant 0.000000e+00 : f32
    %10 = vector.broadcast %cst_6 : f32 to vector<32x17xf32>
    %11 = tpu.concatenate %10, %9, %10 in 1 : vector<32x17xf32>, vector<32x256xf32>, vector<32x17xf32> -> vector<32x290xf32>
    %12 = tpu.iota {dimensions = array<i32: 1>} : vector<1x256xi32>
    %c16_i32 = arith.constant 16 : i32
    %c0_i32 = arith.constant 0 : i32
    %13 = arith.cmpi eq, %c16_i32, %c0_i32 : i32
    %c1_i32 = arith.constant 1 : i32
    %14 = arith.select %13, %c1_i32, %c16_i32 : i32
    %15 = vector.broadcast %14 : i32 to vector<1x256xi32>
    %16 = arith.remsi %12, %15 : vector<1x256xi32>
    %c0_i32_7 = arith.constant 0 : i32
    %17 = vector.broadcast %c0_i32_7 : i32 to vector<1x256xi32>
    %18 = arith.cmpi ne, %16, %17 : vector<1x256xi32>
    %c0_i32_8 = arith.constant 0 : i32
    %19 = vector.broadcast %c0_i32_8 : i32 to vector<1x256xi32>
    %20 = arith.cmpi slt, %16, %19 : vector<1x256xi32>
    %c0_i32_9 = arith.constant 0 : i32
    %21 = arith.cmpi slt, %14, %c0_i32_9 : i32
    %22 = vector.broadcast %21 : i1 to vector<1x256xi1>
    %23 = vector.broadcast %22 : vector<1x256xi1> to vector<1x256xi1>
    %24 = arith.xori %20, %23 : vector<1x256xi1>
    %25 = arith.andi %24, %18 : vector<1x256xi1>
    %26 = vector.broadcast %14 : i32 to vector<1x256xi32>
    %27 = arith.addi %16, %26 : vector<1x256xi32>
    %28 = arith.select %25, %27, %16 : vector<1x256xi1>, vector<1x256xi32>
    %c0_10 = arith.constant 0 : index
    %c0_11 = arith.constant 0 : index
    %c0_12 = arith.constant 0 : index
    %29 = vector.load %arg5[%c0_10, %c0_11, %c0_12] : memref<3x8x96xf32, #tpu.memory_space<vmem>>, vector<3x8x96xf32>
    %30 = arith.truncf %29 : vector<3x8x96xf32> to vector<3x8x96xbf16>
    %cst_13 = arith.constant 0.000000e+00 : f32
    %31 = vector.broadcast %cst_13 : f32 to vector<8x256xf32>
    %32 = vector.extract_strided_slice %11 {offsets = [0, 0], sizes = [32, 256], strides = [1, 1]} : vector<32x290xf32> to vector<32x256xf32>
    %c1_i32_14 = arith.constant 1 : i32
    %33 = vector.broadcast %c1_i32_14 : i32 to vector<1x256xi32>
    %34 = arith.cmpi sge, %28, %33 : vector<1x256xi32>
    %cst_15 = arith.constant 0.000000e+00 : f32
    %35 = vector.shape_cast %34 : vector<1x256xi1> to vector<1x256xi1>
    %36 = vector.broadcast %35 : vector<1x256xi1> to vector<32x256xi1>
    %37 = vector.broadcast %cst_15 : f32 to vector<32x256xf32>
    %38 = arith.select %36, %32, %37 : vector<32x256xi1>, vector<32x256xf32>
    %39 = vector.extract_strided_slice %11 {offsets = [0, 1], sizes = [32, 256], strides = [1, 1]} : vector<32x290xf32> to vector<32x256xf32>
    %40 = vector.extract_strided_slice %11 {offsets = [0, 2], sizes = [32, 256], strides = [1, 1]} : vector<32x290xf32> to vector<32x256xf32>
    %c14_i32 = arith.constant 14 : i32
    %41 = vector.broadcast %c14_i32 : i32 to vector<1x256xi32>
    %42 = arith.cmpi sle, %28, %41 : vector<1x256xi32>
    %cst_16 = arith.constant 0.000000e+00 : f32
    %43 = vector.shape_cast %42 : vector<1x256xi1> to vector<1x256xi1>
    %44 = vector.broadcast %43 : vector<1x256xi1> to vector<32x256xi1>
    %45 = vector.broadcast %cst_16 : f32 to vector<32x256xf32>
    %46 = arith.select %44, %40, %45 : vector<32x256xi1>, vector<32x256xf32>
    %47 = tpu.concatenate %38, %39, %46 in 0 : vector<32x256xf32>, vector<32x256xf32>, vector<32x256xf32> -> vector<96x256xf32>
    %48 = arith.truncf %47 : vector<96x256xf32> to vector<96x256xbf16>
    %49 = vector.extract_strided_slice %30 {offsets = [0, 0, 0], sizes = [1, 8, 96], strides = [1, 1, 1]} : vector<3x8x96xbf16> to vector<1x8x96xbf16>
    %50 = vector.shape_cast %49 : vector<1x8x96xbf16> to vector<8x96xbf16>
    %cst_17 = arith.constant dense<0.000000e+00> : vector<8x256xf32>
    %51 = tpu.matmul %50, %48, %cst_17 {dimension_numbers = #tpu.dot_dimension_numbers<[1], [0], [0], [1], [0, 0, 1, 1], [], []>} : vector<8x96xbf16>, vector<96x256xbf16>, vector<8x256xf32> -> vector<8x256xf32>
    %52 = arith.addf %31, %51 : vector<8x256xf32>
    %53 = vector.extract_strided_slice %11 {offsets = [0, 16], sizes = [32, 256], strides = [1, 1]} : vector<32x290xf32> to vector<32x256xf32>
    %c1_i32_18 = arith.constant 1 : i32
    %54 = vector.broadcast %c1_i32_18 : i32 to vector<1x256xi32>
    %55 = arith.cmpi sge, %28, %54 : vector<1x256xi32>
    %cst_19 = arith.constant 0.000000e+00 : f32
    %56 = vector.shape_cast %55 : vector<1x256xi1> to vector<1x256xi1>
    %57 = vector.broadcast %56 : vector<1x256xi1> to vector<32x256xi1>
    %58 = vector.broadcast %cst_19 : f32 to vector<32x256xf32>
    %59 = arith.select %57, %53, %58 : vector<32x256xi1>, vector<32x256xf32>
    %60 = vector.extract_strided_slice %11 {offsets = [0, 17], sizes = [32, 256], strides = [1, 1]} : vector<32x290xf32> to vector<32x256xf32>
    %61 = vector.extract_strided_slice %11 {offsets = [0, 18], sizes = [32, 256], strides = [1, 1]} : vector<32x290xf32> to vector<32x256xf32>
    %c14_i32_20 = arith.constant 14 : i32
    %62 = vector.broadcast %c14_i32_20 : i32 to vector<1x256xi32>
    %63 = arith.cmpi sle, %28, %62 : vector<1x256xi32>
    %cst_21 = arith.constant 0.000000e+00 : f32
    %64 = vector.shape_cast %63 : vector<1x256xi1> to vector<1x256xi1>
    %65 = vector.broadcast %64 : vector<1x256xi1> to vector<32x256xi1>
    %66 = vector.broadcast %cst_21 : f32 to vector<32x256xf32>
    %67 = arith.select %65, %61, %66 : vector<32x256xi1>, vector<32x256xf32>
    %68 = tpu.concatenate %59, %60, %67 in 0 : vector<32x256xf32>, vector<32x256xf32>, vector<32x256xf32> -> vector<96x256xf32>
    %69 = arith.truncf %68 : vector<96x256xf32> to vector<96x256xbf16>
    %70 = vector.extract_strided_slice %30 {offsets = [1, 0, 0], sizes = [1, 8, 96], strides = [1, 1, 1]} : vector<3x8x96xbf16> to vector<1x8x96xbf16>
    %71 = vector.shape_cast %70 : vector<1x8x96xbf16> to vector<8x96xbf16>
    %cst_22 = arith.constant dense<0.000000e+00> : vector<8x256xf32>
    %72 = tpu.matmul %71, %69, %cst_22 {dimension_numbers = #tpu.dot_dimension_numbers<[1], [0], [0], [1], [0, 0, 1, 1], [], []>} : vector<8x96xbf16>, vector<96x256xbf16>, vector<8x256xf32> -> vector<8x256xf32>
    %73 = arith.addf %52, %72 : vector<8x256xf32>
    %74 = vector.extract_strided_slice %11 {offsets = [0, 32], sizes = [32, 256], strides = [1, 1]} : vector<32x290xf32> to vector<32x256xf32>
    %c1_i32_23 = arith.constant 1 : i32
    %75 = vector.broadcast %c1_i32_23 : i32 to vector<1x256xi32>
    %76 = arith.cmpi sge, %28, %75 : vector<1x256xi32>
    %cst_24 = arith.constant 0.000000e+00 : f32
    %77 = vector.shape_cast %76 : vector<1x256xi1> to vector<1x256xi1>
    %78 = vector.broadcast %77 : vector<1x256xi1> to vector<32x256xi1>
    %79 = vector.broadcast %cst_24 : f32 to vector<32x256xf32>
    %80 = arith.select %78, %74, %79 : vector<32x256xi1>, vector<32x256xf32>
    %81 = vector.extract_strided_slice %11 {offsets = [0, 33], sizes = [32, 256], strides = [1, 1]} : vector<32x290xf32> to vector<32x256xf32>
    %82 = vector.extract_strided_slice %11 {offsets = [0, 34], sizes = [32, 256], strides = [1, 1]} : vector<32x290xf32> to vector<32x256xf32>
    %c14_i32_25 = arith.constant 14 : i32
    %83 = vector.broadcast %c14_i32_25 : i32 to vector<1x256xi32>
    %84 = arith.cmpi sle, %28, %83 : vector<1x256xi32>
    %cst_26 = arith.constant 0.000000e+00 : f32
    %85 = vector.shape_cast %84 : vector<1x256xi1> to vector<1x256xi1>
    %86 = vector.broadcast %85 : vector<1x256xi1> to vector<32x256xi1>
    %87 = vector.broadcast %cst_26 : f32 to vector<32x256xf32>
    %88 = arith.select %86, %82, %87 : vector<32x256xi1>, vector<32x256xf32>
    %89 = tpu.concatenate %80, %81, %88 in 0 : vector<32x256xf32>, vector<32x256xf32>, vector<32x256xf32> -> vector<96x256xf32>
    %90 = arith.truncf %89 : vector<96x256xf32> to vector<96x256xbf16>
    %91 = vector.extract_strided_slice %30 {offsets = [2, 0, 0], sizes = [1, 8, 96], strides = [1, 1, 1]} : vector<3x8x96xbf16> to vector<1x8x96xbf16>
    %92 = vector.shape_cast %91 : vector<1x8x96xbf16> to vector<8x96xbf16>
    %cst_27 = arith.constant dense<0.000000e+00> : vector<8x256xf32>
    %93 = tpu.matmul %92, %90, %cst_27 {dimension_numbers = #tpu.dot_dimension_numbers<[1], [0], [0], [1], [0, 0, 1, 1], [], []>} : vector<8x96xbf16>, vector<96x256xbf16>, vector<8x256xf32> -> vector<8x256xf32>
    %94 = arith.addf %73, %93 : vector<8x256xf32>
    %95 = vector.shape_cast %94 : vector<8x256xf32> to vector<1x8x256xf32>
    %c0_28 = arith.constant 0 : index
    %c0_29 = arith.constant 0 : index
    %c0_30 = arith.constant 0 : index
    %96 = vector.load %arg6[%c0_28, %c0_29, %c0_30] : memref<1x12x256xf32, #tpu.memory_space<vmem>>, vector<1x8x256xf32>
    tpu.vector_store %arg6[%c0_28, %c0_29, %c0_30], %95 {strides = array<i32>} : memref<1x12x256xf32, #tpu.memory_space<vmem>>, vector<1x8x256xf32>,
    %c0_31 = arith.constant 0 : index
    %c0_32 = arith.constant 0 : index
    %c0_33 = arith.constant 0 : index
    %97 = vector.load %arg2[%c0_31, %c0_32, %c0_33] : memref<1x4x256xf32, #tpu.memory_space<vmem>>, vector<1x4x256xf32>
    %c0_34 = arith.constant 0 : index
    %c8 = arith.constant 8 : index
    %c0_35 = arith.constant 0 : index
    %98 = vector.load %arg6[%c0_34, %c8, %c0_35] : memref<1x12x256xf32, #tpu.memory_space<vmem>>, vector<1x4x256xf32>
    tpu.vector_store %arg6[%c0_34, %c8, %c0_35], %97 {strides = array<i32>} : memref<1x12x256xf32, #tpu.memory_space<vmem>>, vector<1x4x256xf32>,
    return
  }
  func.func @transform_0(%arg0: i32) -> (i32, i32, i32) {
    %c0_i32 = arith.constant 0 : i32
    %c0_i32_0 = arith.constant 0 : i32
    %c0_i32_1 = arith.constant 0 : i32
    return %arg0, %c0_i32, %c0_i32_0 : i32, i32, i32
  }
  func.func @transform_1(%arg0: i32) -> (i32, i32, i32) {
    %c0_i32 = arith.constant 0 : i32
    %c0_i32_0 = arith.constant 0 : i32
    %c0_i32_1 = arith.constant 0 : i32
    return %arg0, %c0_i32, %c0_i32_0 : i32, i32, i32
  }
  func.func @transform_2(%arg0: i32) -> (i32, i32) {
    %c0_i32 = arith.constant 0 : i32
    %c0_i32_0 = arith.constant 0 : i32
    %c0_i32_1 = arith.constant 0 : i32
    return %c0_i32, %c0_i32_0 : i32, i32
  }
  func.func @transform_3(%arg0: i32) -> (i32, i32) {
    %c0_i32 = arith.constant 0 : i32
    %c0_i32_0 = arith.constant 0 : i32
    %c0_i32_1 = arith.constant 0 : i32
    return %c0_i32, %c0_i32_0 : i32, i32
  }
  func.func @transform_4(%arg0: i32) -> (i32, i32, i32) {
    %c0_i32 = arith.constant 0 : i32
    %c0_i32_0 = arith.constant 0 : i32
    %c0_i32_1 = arith.constant 0 : i32
    %c0_i32_2 = arith.constant 0 : i32
    return %c0_i32, %c0_i32_0, %c0_i32_1 : i32, i32, i32
  }
  func.func @transform_5(%arg0: i32) -> (i32, i32, i32) {
    %c0_i32 = arith.constant 0 : i32
    %c0_i32_0 = arith.constant 0 : i32
    %c0_i32_1 = arith.constant 0 : i32
    return %arg0, %c0_i32, %c0_i32_0 : i32, i32, i32
  }
}

</mosaic_0001>

<llo_original>
// kernel: bottleneck_forward.2
$region0: #{bottleneck_forward.2}
  #allocation0 [shape = 'u32[]', space=smem, size = 0x4, offset = 0x4, fixed_abs, tag = 'smem constant byte address 0x4 - core index']
  #allocation1 [shape = 'u32[144,128]{1,0:T(1,128)}', space=vmem, size = 0x12000, scoped, tag = 'internal scratch']
  %s0 = inlined_call_operand.vmem [shape: f32[2,4,256], index: 0, kind: input, shape index: {}]
  %s1 = inlined_call_operand.vmem [shape: f32[4,1], index: 1, kind: input, shape index: {}]
  %s2 = inlined_call_operand.vmem [shape: f32[4,1], index: 2, kind: input, shape index: {}]
  %s3 = inlined_call_operand.vmem [shape: f32[32,4], index: 3, kind: input, shape index: {}]
  %s4 = inlined_call_operand.vmem [shape: f32[2,32,256], index: 4, kind: output, shape index: {0}]
  %s5 = inlined_call_operand.vmem [shape: f32[32,1], index: 5, kind: output, shape index: {1}]
  %s6 = inlined_call_operand.vmem [shape: f32[32,1], index: 6, kind: output, shape index: {2}]
  %7 = xla_tuple %s4, %s5, %s6
  %s8 = sld [smem:[#allocation0]]
  $region69: #{bottleneck_forward.2} parent=0
    _
  %s10 = ssub.s32 1, %s8
  %s11 = scalar_select 0, %s10, %s8
  loop: start=0, step=1, limit=4
  $region2: #{bottleneck_forward.2} parent=0 // loop_pre_header
    _
  $region3: #{bottleneck_forward.2} parent=0 // loop_header
    %s13 = sphi 0, %s17
    %p14 = scmp.ge.s32.totalorder %s13, 4
    %s23 = sphi 0, %s25
    %s26 = sphi 0, %s23
    %s27 = sphi 0, %s26
    %s43 = sphi 0, %s27
    %s47 = sphi 0, %s47
    %s49 = sphi 0, %s47
    %s50 = sphi 0, %s49
    %s64 = sphi 0, %s50
    %s68 = sphi 0, %s68
    %s70 = sphi 0, %s68
    %s71 = sphi 0, %s70
    %s85 = sphi 0, %s71
    %s89 = sphi 0, %s89
    %s91 = sphi 0, %s89
    %s92 = sphi 0, %s91
    %s106 = sphi 0, %s92
    %s112 = sphi 0, %s114
    %s115 = sphi 0, %s112
    %s116 = sphi 0, %s115
    %s132 = sphi 0, %s116
    %s136 = sphi 0, %s136
    %s138 = sphi 0, %s136
    %s139 = sphi 0, %s138
    %s153 = sphi 0, %s139
    %s157 = sphi 0, %s157
    %s159 = sphi 0, %s157
    %s160 = sphi 0, %s159
    %s174 = sphi 0, %s160
  $region4: #{bottleneck_forward.2} parent=0 // loop_header_branch
    %16 = sbr.rel (%p14) target = $region8
  $region5: #{bottleneck_forward.2} parent=0 // loop_body
    %s18 = ssub.s32 %s13, 1
    %s19 = ssub.s32 %s13, 2
    %s20 = sadd.s32 %s13, 1
    %s21 = ssub.s32 %s13, %s20
    %p22 = scmp.eq.s32.totalorder %s21, 0
    %s24 = sadd.s32 %s23, 1
    %s25 = scalar_select %p22, %s23, %s24
    %p28 = pneg %p22
    %p29 = scmp.eq.s32.totalorder %s13, 1
    %p30 = por %p28, %p29
    %p31 = scmp.ne.s32.totalorder %s23, %s26
    %p32 = scmp.eq.s32.totalorder %s13, 0
    %p33 = por %p31, %p32
    %p34 = scmp.ne.s32.totalorder %s23, %s26
    %p35 = scmp.eq.s32.totalorder %s18, 1
    %p36 = por %p34, %p35
    %p37 = scmp.ne.s32.totalorder %s26, %s27
    %p38 = scmp.eq.s32.totalorder %s18, 0
    %p39 = por %p37, %p38
    %p40 = scmp.ne.s32.totalorder %s26, %s27
    %p41 = scmp.eq.s32.totalorder %s19, 1
    %p42 = por %p40, %p41
    %p44 = scmp.ne.s32.totalorder %s27, %s43
    %p45 = scmp.eq.s32.totalorder %s19, 0
    %p46 = por %p44, %p45
    %s48 = sadd.s32 %s47, 1
    %p51 = scmp.eq.s32.totalorder %s13, 1
    %p52 = scmp.ne.s32.totalorder %s47, %s49
    %p53 = scmp.eq.s32.totalorder %s13, 0
    %p54 = por %p52, %p53
    %p55 = scmp.ne.s32.totalorder %s47, %s49
    %p56 = scmp.eq.s32.totalorder %s18, 1
    %p57 = por %p55, %p56
    %p58 = scmp.ne.s32.totalorder %s49, %s50
    %p59 = scmp.eq.s32.totalorder %s18, 0
    %p60 = por %p58, %p59
    %p61 = scmp.ne.s32.totalorder %s49, %s50
    %p62 = scmp.eq.s32.totalorder %s19, 1
    %p63 = por %p61, %p62
    %p65 = scmp.ne.s32.totalorder %s50, %s64
    %p66 = scmp.eq.s32.totalorder %s19, 0
    %p67 = por %p65, %p66
    %s69 = sadd.s32 %s68, 1
    %p72 = scmp.eq.s32.totalorder %s13, 1
    %p73 = scmp.ne.s32.totalorder %s68, %s70
    %p74 = scmp.eq.s32.totalorder %s13, 0
    %p75 = por %p73, %p74
    %p76 = scmp.ne.s32.totalorder %s68, %s70
    %p77 = scmp.eq.s32.totalorder %s18, 1
    %p78 = por %p76, %p77
    %p79 = scmp.ne.s32.totalorder %s70, %s71
    %p80 = scmp.eq.s32.totalorder %s18, 0
    %p81 = por %p79, %p80
    %p82 = scmp.ne.s32.totalorder %s70, %s71
    %p83 = scmp.eq.s32.totalorder %s19, 1
    %p84 = por %p82, %p83
    %p86 = scmp.ne.s32.totalorder %s71, %s85
    %p87 = scmp.eq.s32.totalorder %s19, 0
    %p88 = por %p86, %p87
    %s90 = sadd.s32 %s89, 1
    %p93 = scmp.eq.s32.totalorder %s13, 1
    %p94 = scmp.ne.s32.totalorder %s89, %s91
    %p95 = scmp.eq.s32.totalorder %s13, 0
    %p96 = por %p94, %p95
    %p97 = scmp.ne.s32.totalorder %s89, %s91
    %p98 = scmp.eq.s32.totalorder %s18, 1
    %p99 = por %p97, %p98
    %p100 = scmp.ne.s32.totalorder %s91, %s92
    %p101 = scmp.eq.s32.totalorder %s18, 0
    %p102 = por %p100, %p101
    %p103 = scmp.ne.s32.totalorder %s91, %s92
    %p104 = scmp.eq.s32.totalorder %s19, 1
    %p105 = por %p103, %p104
    %p107 = scmp.ne.s32.totalorder %s92, %s106
    %p108 = scmp.eq.s32.totalorder %s19, 0
    %p109 = por %p107, %p108
    %s110 = ssub.s32 %s13, %s20
    %p111 = scmp.eq.s32.totalorder %s110, 0
    %s113 = sadd.s32 %s112, 1
    %s114 = scalar_select %p111, %s112, %s113
    %p117 = pneg %p111
    %p118 = scmp.eq.s32.totalorder %s13, 1
    %p119 = por %p117, %p118
    %p120 = scmp.ne.s32.totalorder %s112, %s115
    %p121 = scmp.eq.s32.totalorder %s13, 0
    %p122 = por %p120, %p121
    %p123 = scmp.ne.s32.totalorder %s112, %s115
    %p124 = scmp.eq.s32.totalorder %s18, 1
    %p125 = por %p123, %p124
    %p126 = scmp.ne.s32.totalorder %s115, %s116
    %p127 = scmp.eq.s32.totalorder %s18, 0
    %p128 = por %p126, %p127
    %p129 = scmp.ne.s32.totalorder %s115, %s116
    %p130 = scmp.eq.s32.totalorder %s19, 1
    %p131 = por %p129, %p130
    %p133 = scmp.ne.s32.totalorder %s116, %s132
    %p134 = scmp.eq.s32.totalorder %s19, 0
    %p135 = por %p133, %p134
    %s137 = sadd.s32 %s136, 1
    %p140 = scmp.eq.s32.totalorder %s13, 1
    %p141 = scmp.ne.s32.totalorder %s136, %s138
    %p142 = scmp.eq.s32.totalorder %s13, 0
    %p143 = por %p141, %p142
    %p144 = scmp.ne.s32.totalorder %s136, %s138
    %p145 = scmp.eq.s32.totalorder %s18, 1
    %p146 = por %p144, %p145
    %p147 = scmp.ne.s32.totalorder %s138, %s139
    %p148 = scmp.eq.s32.totalorder %s18, 0
    %p149 = por %p147, %p148
    %p150 = scmp.ne.s32.totalorder %s138, %s139
    %p151 = scmp.eq.s32.totalorder %s19, 1
    %p152 = por %p150, %p151
    %p154 = scmp.ne.s32.totalorder %s139, %s153
    %p155 = scmp.eq.s32.totalorder %s19, 0
    %p156 = por %p154, %p155
    %s158 = sadd.s32 %s157, 1
    %p161 = scmp.eq.s32.totalorder %s13, 1
    %p162 = scmp.ne.s32.totalorder %s157, %s159
    %p163 = scmp.eq.s32.totalorder %s13, 0
    %p164 = por %p162, %p163
    %p165 = scmp.ne.s32.totalorder %s157, %s159
    %p166 = scmp.eq.s32.totalorder %s18, 1
    %p167 = por %p165, %p166
    %p168 = scmp.ne.s32.totalorder %s159, %s160
    %p169 = scmp.eq.s32.totalorder %s18, 0
    %p170 = por %p168, %p169
    %p171 = scmp.ne.s32.totalorder %s159, %s160
    %p172 = scmp.eq.s32.totalorder %s19, 1
    %p173 = por %p171, %p172
    %p175 = scmp.ne.s32.totalorder %s160, %s174
    %p176 = scmp.eq.s32.totalorder %s19, 0
    %p177 = por %p175, %p176
    %p178 = scmp.le.s32.totalorder 1, %s13
    %p179 = scmp.lt.s32.totalorder %s13, 3
    %p180 = pnand %p178, %p179
    %p181 = pneg %p180
    // Predicated region
    $region9: #{bottleneck_forward.2} parent=5 // pred_check
      _
    $region10: #{bottleneck_forward.2} parent=5 // pred_check_branch
      %183 = sbr.rel (%p180) target = $region12
    $region11: #{bottleneck_forward.2} parent=5 // pred_region
      %s184 = ssub.s32 %s13, 1
      // Predicated region
      $region13: #{bottleneck_forward.2} parent=11 // pred_check
        %p185 = pneg %p60
      $region14: #{bottleneck_forward.2} parent=11 // pred_check_branch
        %187 = sbr.rel (%p185) target = $region16
      $region15: #{bottleneck_forward.2} parent=11 // pred_region
        _
      $region16: #{bottleneck_forward.2} parent=11 // pred_fallthru
        _
      // Predicated region
      $region17: #{bottleneck_forward.2} parent=11 // pred_check
        %p188 = pneg %p81
      $region18: #{bottleneck_forward.2} parent=11 // pred_check_branch
        %190 = sbr.rel (%p188) target = $region20
      $region19: #{bottleneck_forward.2} parent=11 // pred_region
        _
      $region20: #{bottleneck_forward.2} parent=11 // pred_fallthru
        _
      // Predicated region
      $region21: #{bottleneck_forward.2} parent=11 // pred_check
        %p191 = pneg %p102
      $region22: #{bottleneck_forward.2} parent=11 // pred_check_branch
        %193 = sbr.rel (%p191) target = $region24
      $region23: #{bottleneck_forward.2} parent=11 // pred_region
        _
      $region24: #{bottleneck_forward.2} parent=11 // pred_fallthru
        _
    $region12: #{bottleneck_forward.2} parent=5 // pred_fallthru
      _
    %p194 = scmp.lt.s32.totalorder %s13, 2
    // Predicated region
    $region25: #{bottleneck_forward.2} parent=5 // pred_check
      %p195 = pneg %p194
    $region26: #{bottleneck_forward.2} parent=5 // pred_check_branch
      %197 = sbr.rel (%p195) target = $region28
    $region27: #{bottleneck_forward.2} parent=5 // pred_region
      // Predicated region
      $region29: #{bottleneck_forward.2} parent=27 // pred_check
        %p198 = pneg %p33
      $region30: #{bottleneck_forward.2} parent=27 // pred_check_branch
        %200 = sbr.rel (%p198) target = $region32
      $region31: #{bottleneck_forward.2} parent=27 // pred_region
        %p201 = scmp.lt.s32.totalorder %s13, 1
        %s202 = scalar_select %p201, %s13, 1
        %s203 = smul.addr %s202, 2
        %s204 = smul.addr %s203, 4
        %s205 = scalar_lea.vmem %s0, %s204
      $region32: #{bottleneck_forward.2} parent=27 // pred_fallthru
        _
    $region28: #{bottleneck_forward.2} parent=5 // pred_fallthru
      _
    %p206 = scmp.le.s32.totalorder 1, %s13
    %p207 = scmp.lt.s32.totalorder %s13, 3
    %p208 = pnand %p206, %p207
    %p209 = pneg %p208
    // Predicated region
    $region33: #{bottleneck_forward.2} parent=5 // pred_check
      _
    $region34: #{bottleneck_forward.2} parent=5 // pred_check_branch
      %211 = sbr.rel (%p208) target = $region36
    $region35: #{bottleneck_forward.2} parent=5 // pred_region
      %s212 = ssub.s32 %s13, 1
      %p213 = scmp.lt.s32.totalorder %s18, 1
      %s214 = scalar_select %p213, %s18, 1
      %s215 = smul.addr %s214, 2
      %s216 = smul.addr %s215, 4
      %s217 = scalar_lea.vmem %s0, %s216
      %p218 = pneg %p39
      %p219 = pneg %p36
      %p220 = pneg %p60
      %p221 = pneg %p57
      %p222 = pneg %p81
      %p223 = pneg %p78
      %p224 = pneg %p102
      %p225 = pneg %p99
      %p226 = pneg %p128
      %p227 = pneg %p125
      %p228 = scmp.lt.s32.totalorder %s18, 1
      %s229 = scalar_select %p228, %s18, 1
      %s230 = smul.addr %s229, 8
      %s231 = smul.addr %s230, 8
      %s232 = scalar_lea.vmem %s4, %s231
      %p233 = pneg %p149
      %p234 = pneg %p146
      %p235 = pneg %p170
      %p236 = pneg %p167
      %p237 = scmp.lt.s32.totalorder %s18, 1
      %s238 = scalar_select %p237, %s18, 1
      %s239 = smul.addr %s238, 2
      %s240 = smul.addr %s239, 4
      %s241 = scalar_lea.vmem %s0, %s240
      %p242 = scmp.lt.s32.totalorder %s18, 1
      %s243 = scalar_select %p242, %s18, 1
      %s244 = smul.addr %s243, 8
      %s245 = smul.addr %s244, 8
      %s246 = scalar_lea.vmem %s4, %s245
      %v248 = vld [vmem:[%s241] sm:$0xff]
      %v249 = vld [vmem:[%s1] sm:$0xf]
      %251 = vset.pattern.permute.xlu0 0
      %252 = vperm.xlu0 %251, %v249
      %v253 = vpop.permute.xlu0 %252
      %v255 = vunpack.c.l.s4 839922192
      %v256 = vunpack.c.0.s8 %v255
      %v257 = vlaneseq
      %v258 = vshrl.u32 %v257, 7
      %v259 = vsub.s32 %v256, %v258
      %v260 = vrot.slane %v253, %v259
      %v262 = vmul.f32 %v248, %v260
      %v263 = vld [vmem:[%s2] sm:$0xf]
      %265 = vset.pattern.permute.xlu0 0
      %266 = vperm.xlu0 %265, %v263
      %v267 = vpop.permute.xlu0 %266
      %v269 = vunpack.c.l.s4 839922192
      %v270 = vunpack.c.0.s8 %v269
      %v271 = vlaneseq
      %v272 = vshrl.u32 %v271, 7
      %v273 = vsub.s32 %v270, %v272
      %v274 = vrot.slane %v267, %v273
      %v276 = vadd.f32 %v262, %v274
      %v277 = vmax.f32 %v276, 0.0
      %v278 = vld [vmem:[%s3] sm:$0xff]
      %v279 = vld [vmem:[%s3 + $0x8] sm:$0xff]
      %v280 = vld [vmem:[%s3 + $0x10] sm:$0xff]
      %v281 = vld [vmem:[%s3 + $0x18] sm:$0xff]
      %v282 = vpack.c.bf16 %v279, %v278
      %v283 = vpack.c.bf16 %v281, %v280
      %v285 = vcombine.high %v277, %v277
      %v287 = vpack.c.bf16 %v277, %v277
      %v288 = vpack.c.bf16 %v285, %v285
      %vm289 = vcmask 31744
      %v291 = vsel %vm289, %v282, 0
      %v294 = vsel %vm289, %v283, 0
      %vm296 = vcmask 1041408
      %v298 = vsel %vm296, %v287, 0
      %v301 = vsel %vm296, %v288, 0
      %303 = vmatprep.subr.bf16.mxu0 %v301
      %304 = vmatpush1.bf16.msra.mxu0 %v298
      %305 = vmatprep.subr.bf16.mxu0 0
      %306 = vmatpush1.bf16.msra.mxu0 0
      %307 = vmatprep.subr.bf16.mxu0 0
      %308 = vmatpush1.bf16.msra.mxu0 0
      %309 = vmatprep.subr.bf16.mxu0 0
      %310 = vmatpush1.bf16.msra.mxu0 0
      %311 = vmatprep.subr.bf16.mxu0 0
      %312 = vmatpush1.bf16.msra.mxu0 0
      %313 = vmatprep.subr.bf16.mxu0 0
      %314 = vmatpush1.bf16.msra.mxu0 0
      %315 = vmatprep.subr.bf16.mxu0 0
      %316 = vmatpush1.bf16.msra.mxu0 0
      %317 = vmatprep.subr.bf16.mxu0 0
      %318 = vmatpush1.bf16.msra.mxu0 0
      %319 = vmatprep.subr.bf16.mxu0 0
      %320 = vmatpush1.bf16.msra.mxu0 0
      %321 = vmatprep.subr.bf16.mxu0 0
      %322 = vmatpush1.bf16.msra.mxu0 0
      %323 = vmatprep.subr.bf16.mxu0 0
      %324 = vmatpush1.bf16.msra.mxu0 0
      %325 = vmatprep.subr.bf16.mxu0 0
      %326 = vmatpush1.bf16.msra.mxu0 0
      %327 = vmatprep.subr.bf16.mxu0 0
      %328 = vmatpush1.bf16.msra.mxu0 0
      %329 = vmatprep.subr.bf16.mxu0 0
      %330 = vmatpush1.bf16.msra.mxu0 0
      %331 = vmatprep.subr.bf16.mxu0 0
      %332 = vmatpush1.bf16.msra.mxu0 0
      %333 = vmatprep.subr.bf16.mxu0 0
      %334 = vmatpush1.bf16.msra.mxu0 0
      %335 = vmatprep.mubr.bf16.mxu0 0
      %336 = vmatmul.mubr.bf16.gmra.mrb[0].mxu0 %v291
      %v337 = vpop.f32.mrb[0].mxu0
      %v338 = vadd.f32 0.0, %v337
      %v339 = vpop.f32.mrb[0].mxu0
      %v340 = vadd.f32 0.0, %v339
      %v341 = vpop.f32.mrb[0].mxu0
      %v342 = vadd.f32 0.0, %v341
      %v343 = vpop.f32.mrb[0].mxu0
      %v344 = vadd.f32 0.0, %v343
      %345 = vmatprep.mubr.bf16.mxu0 0
      %346 = vmatmul.mubr.bf16.gmra.mrb[0].mxu0 %v294
      %v347 = vpop.f32.mrb[0].mxu0
      %v348 = vadd.f32 0.0, %v347
      %v349 = vpop.f32.mrb[0].mxu0
      %v350 = vadd.f32 0.0, %v349
      %v351 = vpop.f32.mrb[0].mxu0
      %v352 = vadd.f32 0.0, %v351
      %v353 = vpop.f32.mrb[0].mxu0
      %v354 = vadd.f32 0.0, %v353
      %355 = vdwg.mxu0
      %356 = vst [vmem:[%s246] sm:$0xff] %v338
      %357 = vst [vmem:[%s246 + $0x8] sm:$0xff] %v340
      %358 = vst [vmem:[%s246 + $0x10] sm:$0xff] %v342
      %359 = vst [vmem:[%s246 + $0x18] sm:$0xff] %v344
      %360 = vst [vmem:[%s246 + $0x20] sm:$0xff] %v348
      %361 = vst [vmem:[%s246 + $0x28] sm:$0xff] %v350
      %362 = vst [vmem:[%s246 + $0x30] sm:$0xff] %v352
      %363 = vst [vmem:[%s246 + $0x38] sm:$0xff] %v354
      %p364 = scmp.eq.s32.totalorder %s18, 0
      // Predicated region
      $region37: #{bottleneck_forward.2} parent=35 // pred_check
        %p365 = pneg %p364
      $region38: #{bottleneck_forward.2} parent=35 // pred_check_branch
        %367 = sbr.rel (%p365) target = $region40
      $region39: #{bottleneck_forward.2} parent=35 // pred_region
        %vm368 = vcmask 7168
        %369 = vst.msk [vmem:[%s5] sm:$0xff] %vm368, 0.0
        %370 = vst.msk [vmem:[%s5 + $0x8] sm:$0xff] %vm368, 0.0
        %371 = vst.msk [vmem:[%s5 + $0x10] sm:$0xff] %vm368, 0.0
        %372 = vst.msk [vmem:[%s5 + $0x18] sm:$0xff] %vm368, 0.0
        %373 = vst.msk [vmem:[%s6] sm:$0xff] %vm368, 0.0
        %374 = vst.msk [vmem:[%s6 + $0x8] sm:$0xff] %vm368, 0.0
        %375 = vst.msk [vmem:[%s6 + $0x10] sm:$0xff] %vm368, 0.0
        %376 = vst.msk [vmem:[%s6 + $0x18] sm:$0xff] %vm368, 0.0
      $region40: #{bottleneck_forward.2} parent=35 // pred_fallthru
        _
      %v377 = vld [vmem:[%s5] sm:$0xff]
      %v378 = vld [vmem:[%s5 + $0x8] sm:$0xff]
      %v379 = vld [vmem:[%s5 + $0x10] sm:$0xff]
      %v380 = vld [vmem:[%s5 + $0x18] sm:$0xff]
      %v381 = vadd.f32 %v338, %v340
      %382 = vadd.xlane.f32.xlu0 %v381
      %v383 = vpop.xlane.xlu0 %382
      %v384 = vadd.f32 %v342, %v344
      %385 = vadd.xlane.f32.xlu0 %v384
      %v386 = vpop.xlane.xlu0 %385
      %v387 = vadd.f32 %v348, %v350
      %388 = vadd.xlane.f32.xlu0 %v387
      %v389 = vpop.xlane.xlu0 %388
      %v390 = vadd.f32 %v352, %v354
      %391 = vadd.xlane.f32.xlu0 %v390
      %v392 = vpop.xlane.xlu0 %391
      %v393 = vadd.f32 %v377, %v383
      %v394 = vadd.f32 %v378, %v386
      %v395 = vadd.f32 %v379, %v389
      %v396 = vadd.f32 %v380, %v392
      %vm397 = vcmask 7168
      %398 = vst.msk [vmem:[%s5] sm:$0xff] %vm397, %v393
      %399 = vst.msk [vmem:[%s5 + $0x8] sm:$0xff] %vm397, %v394
      %400 = vst.msk [vmem:[%s5 + $0x10] sm:$0xff] %vm397, %v395
      %401 = vst.msk [vmem:[%s5 + $0x18] sm:$0xff] %vm397, %v396
      %v402 = vld [vmem:[%s6] sm:$0xff]
      %v403 = vld [vmem:[%s6 + $0x8] sm:$0xff]
      %v404 = vld [vmem:[%s6 + $0x10] sm:$0xff]
      %v405 = vld [vmem:[%s6 + $0x18] sm:$0xff]
      %v406 = vmul.f32 %v338, %v338
      %v407 = vmul.f32 %v340, %v340
      %v408 = vmul.f32 %v342, %v342
      %v409 = vmul.f32 %v344, %v344
      %v410 = vmul.f32 %v348, %v348
      %v411 = vmul.f32 %v350, %v350
      %v412 = vmul.f32 %v352, %v352
      %v413 = vmul.f32 %v354, %v354
      %v414 = vadd.f32 %v406, %v407
      %415 = vadd.xlane.f32.xlu0 %v414
      %v416 = vpop.xlane.xlu0 %415
      %v417 = vadd.f32 %v408, %v409
      %418 = vadd.xlane.f32.xlu0 %v417
      %v419 = vpop.xlane.xlu0 %418
      %v420 = vadd.f32 %v410, %v411
      %421 = vadd.xlane.f32.xlu0 %v420
      %v422 = vpop.xlane.xlu0 %421
      %v423 = vadd.f32 %v412, %v413
      %424 = vadd.xlane.f32.xlu0 %v423
      %v425 = vpop.xlane.xlu0 %424
      %v426 = vadd.f32 %v402, %v416
      %v427 = vadd.f32 %v403, %v419
      %v428 = vadd.f32 %v404, %v422
      %v429 = vadd.f32 %v405, %v425
      %430 = vst.msk [vmem:[%s6] sm:$0xff] %vm397, %v426
      %431 = vst.msk [vmem:[%s6 + $0x8] sm:$0xff] %vm397, %v427
      %432 = vst.msk [vmem:[%s6 + $0x10] sm:$0xff] %vm397, %v428
      %433 = vst.msk [vmem:[%s6 + $0x18] sm:$0xff] %vm397, %v429
      %p434 = scmp.lt.s32.totalorder %s18, 1
      %s435 = scalar_select %p434, %s18, 1
      %s436 = smul.addr %s435, 8
      %s437 = smul.addr %s436, 8
      %s438 = scalar_lea.vmem %s4, %s437
      // Predicated region
      $region41: #{bottleneck_forward.2} parent=35 // pred_check
        %p439 = pneg %p125
      $region42: #{bottleneck_forward.2} parent=35 // pred_check_branch
        %441 = sbr.rel (%p439) target = $region44
      $region43: #{bottleneck_forward.2} parent=35 // pred_region
        _
      $region44: #{bottleneck_forward.2} parent=35 // pred_fallthru
        _
      // Predicated region
      $region45: #{bottleneck_forward.2} parent=35 // pred_check
        %p442 = pneg %p146
      $region46: #{bottleneck_forward.2} parent=35 // pred_check_branch
        %444 = sbr.rel (%p442) target = $region48
      $region47: #{bottleneck_forward.2} parent=35 // pred_region
        _
      $region48: #{bottleneck_forward.2} parent=35 // pred_fallthru
        _
      // Predicated region
      $region49: #{bottleneck_forward.2} parent=35 // pred_check
        %p445 = pneg %p167
      $region50: #{bottleneck_forward.2} parent=35 // pred_check_branch
        %447 = sbr.rel (%p445) target = $region52
      $region51: #{bottleneck_forward.2} parent=35 // pred_region
        _
      $region52: #{bottleneck_forward.2} parent=35 // pred_fallthru
        _
      // Predicated region
      $region53: #{bottleneck_forward.2} parent=35 // pred_check
        %p448 = pneg %p146
      $region54: #{bottleneck_forward.2} parent=35 // pred_check_branch
        %450 = sbr.rel (%p448) target = $region56
      $region55: #{bottleneck_forward.2} parent=35 // pred_region
        _
      $region56: #{bottleneck_forward.2} parent=35 // pred_fallthru
        _
      // Predicated region
      $region57: #{bottleneck_forward.2} parent=35 // pred_check
        %p451 = pneg %p167
      $region58: #{bottleneck_forward.2} parent=35 // pred_check_branch
        %453 = sbr.rel (%p451) target = $region60
      $region59: #{bottleneck_forward.2} parent=35 // pred_region
        _
      $region60: #{bottleneck_forward.2} parent=35 // pred_fallthru
        _
    $region36: #{bottleneck_forward.2} parent=5 // pred_fallthru
      _
    %p454 = scmp.le.s32.totalorder 2, %s13
    // Predicated region
    $region61: #{bottleneck_forward.2} parent=5 // pred_check
      %p455 = pneg %p454
    $region62: #{bottleneck_forward.2} parent=5 // pred_check_branch
      %457 = sbr.rel (%p455) target = $region64
    $region63: #{bottleneck_forward.2} parent=5 // pred_region
      %s458 = ssub.s32 %s13, 2
      // Predicated region
      $region65: #{bottleneck_forward.2} parent=63 // pred_check
        %p459 = pneg %p131
      $region66: #{bottleneck_forward.2} parent=63 // pred_check_branch
        %461 = sbr.rel (%p459) target = $region68
      $region67: #{bottleneck_forward.2} parent=63 // pred_region
        %p462 = scmp.lt.s32.totalorder %s19, 1
        %s463 = scalar_select %p462, %s19, 1
        %s464 = smul.addr %s463, 8
        %s465 = smul.addr %s464, 8
        %s466 = scalar_lea.vmem %s4, %s465
      $region68: #{bottleneck_forward.2} parent=63 // pred_fallthru
        _
    $region64: #{bottleneck_forward.2} parent=5 // pred_fallthru
      _
  $region6: #{bottleneck_forward.2} parent=0 // loop_footer
    %s17 = sadd.s32 1, %s13
  $region7: #{bottleneck_forward.2} parent=0 // loop_footer_branch
    %12 = sbr.rel target = $region3
  $region8: #{bottleneck_forward.2} parent=0 // loop_exit
    _

// kernel: bottleneck_forward.3
$region0: #{bottleneck_forward.3}
  #allocation0 [shape = 'u32[]', space=smem, size = 0x4, offset = 0x4, fixed_abs, tag = 'smem constant byte address 0x4 - core index']
  #allocation1 [shape = 'u32[144,128]{1,0:T(1,128)}', space=vmem, size = 0x12000, scoped, tag = 'internal scratch']
  %s0 = inlined_call_operand.vmem [shape: f32[2,32,256], index: 0, kind: input, shape index: {}]
  %s1 = inlined_call_operand.vmem [shape: f32[2,4,256], index: 1, kind: input, shape index: {}]
  %s2 = inlined_call_operand.vmem [shape: f32[32,1], index: 2, kind: input, shape index: {}]
  %s3 = inlined_call_operand.vmem [shape: f32[32,1], index: 3, kind: input, shape index: {}]
  %s4 = inlined_call_operand.vmem [shape: f32[3,8,96], index: 4, kind: input, shape index: {}]
  %s5 = inlined_call_operand.vmem [shape: f32[2,12,256], index: 5, kind: output, shape index: {}]
  %s6 = sld [smem:[#allocation0]]
  $region53: #{bottleneck_forward.3} parent=0
    _
  %s8 = ssub.s32 1, %s6
  %s9 = scalar_select 0, %s8, %s6
  loop: start=0, step=1, limit=4
  $region2: #{bottleneck_forward.3} parent=0 // loop_pre_header
    _
  $region3: #{bottleneck_forward.3} parent=0 // loop_header
    %s11 = sphi 0, %s15
    %p12 = scmp.ge.s32.totalorder %s11, 4
    %s21 = sphi 0, %s23
    %s24 = sphi 0, %s21
    %s25 = sphi 0, %s24
    %s41 = sphi 0, %s25
    %s47 = sphi 0, %s49
    %s50 = sphi 0, %s47
    %s51 = sphi 0, %s50
    %s67 = sphi 0, %s51
    %s71 = sphi 0, %s71
    %s73 = sphi 0, %s71
    %s74 = sphi 0, %s73
    %s88 = sphi 0, %s74
    %s92 = sphi 0, %s92
    %s94 = sphi 0, %s92
    %s95 = sphi 0, %s94
    %s109 = sphi 0, %s95
    %s113 = sphi 0, %s113
    %s115 = sphi 0, %s113
    %s116 = sphi 0, %s115
    %s130 = sphi 0, %s116
    %s136 = sphi 0, %s138
    %s139 = sphi 0, %s136
    %s140 = sphi 0, %s139
    %s156 = sphi 0, %s140
  $region4: #{bottleneck_forward.3} parent=0 // loop_header_branch
    %14 = sbr.rel (%p12) target = $region8
  $region5: #{bottleneck_forward.3} parent=0 // loop_body
    %s16 = ssub.s32 %s11, 1
    %s17 = ssub.s32 %s11, 2
    %s18 = sadd.s32 %s11, 1
    %s19 = ssub.s32 %s11, %s18
    %p20 = scmp.eq.s32.totalorder %s19, 0
    %s22 = sadd.s32 %s21, 1
    %s23 = scalar_select %p20, %s21, %s22
    %p26 = pneg %p20
    %p27 = scmp.eq.s32.totalorder %s11, 1
    %p28 = por %p26, %p27
    %p29 = scmp.ne.s32.totalorder %s21, %s24
    %p30 = scmp.eq.s32.totalorder %s11, 0
    %p31 = por %p29, %p30
    %p32 = scmp.ne.s32.totalorder %s21, %s24
    %p33 = scmp.eq.s32.totalorder %s16, 1
    %p34 = por %p32, %p33
    %p35 = scmp.ne.s32.totalorder %s24, %s25
    %p36 = scmp.eq.s32.totalorder %s16, 0
    %p37 = por %p35, %p36
    %p38 = scmp.ne.s32.totalorder %s24, %s25
    %p39 = scmp.eq.s32.totalorder %s17, 1
    %p40 = por %p38, %p39
    %p42 = scmp.ne.s32.totalorder %s25, %s41
    %p43 = scmp.eq.s32.totalorder %s17, 0
    %p44 = por %p42, %p43
    %s45 = ssub.s32 %s11, %s18
    %p46 = scmp.eq.s32.totalorder %s45, 0
    %s48 = sadd.s32 %s47, 1
    %s49 = scalar_select %p46, %s47, %s48
    %p52 = pneg %p46
    %p53 = scmp.eq.s32.totalorder %s11, 1
    %p54 = por %p52, %p53
    %p55 = scmp.ne.s32.totalorder %s47, %s50
    %p56 = scmp.eq.s32.totalorder %s11, 0
    %p57 = por %p55, %p56
    %p58 = scmp.ne.s32.totalorder %s47, %s50
    %p59 = scmp.eq.s32.totalorder %s16, 1
    %p60 = por %p58, %p59
    %p61 = scmp.ne.s32.totalorder %s50, %s51
    %p62 = scmp.eq.s32.totalorder %s16, 0
    %p63 = por %p61, %p62
    %p64 = scmp.ne.s32.totalorder %s50, %s51
    %p65 = scmp.eq.s32.totalorder %s17, 1
    %p66 = por %p64, %p65
    %p68 = scmp.ne.s32.totalorder %s51, %s67
    %p69 = scmp.eq.s32.totalorder %s17, 0
    %p70 = por %p68, %p69
    %s72 = sadd.s32 %s71, 1
    %p75 = scmp.eq.s32.totalorder %s11, 1
    %p76 = scmp.ne.s32.totalorder %s71, %s73
    %p77 = scmp.eq.s32.totalorder %s11, 0
    %p78 = por %p76, %p77
    %p79 = scmp.ne.s32.totalorder %s71, %s73
    %p80 = scmp.eq.s32.totalorder %s16, 1
    %p81 = por %p79, %p80
    %p82 = scmp.ne.s32.totalorder %s73, %s74
    %p83 = scmp.eq.s32.totalorder %s16, 0
    %p84 = por %p82, %p83
    %p85 = scmp.ne.s32.totalorder %s73, %s74
    %p86 = scmp.eq.s32.totalorder %s17, 1
    %p87 = por %p85, %p86
    %p89 = scmp.ne.s32.totalorder %s74, %s88
    %p90 = scmp.eq.s32.totalorder %s17, 0
    %p91 = por %p89, %p90
    %s93 = sadd.s32 %s92, 1
    %p96 = scmp.eq.s32.totalorder %s11, 1
    %p97 = scmp.ne.s32.totalorder %s92, %s94
    %p98 = scmp.eq.s32.totalorder %s11, 0
    %p99 = por %p97, %p98
    %p100 = scmp.ne.s32.totalorder %s92, %s94
    %p101 = scmp.eq.s32.totalorder %s16, 1
    %p102 = por %p100, %p101
    %p103 = scmp.ne.s32.totalorder %s94, %s95
    %p104 = scmp.eq.s32.totalorder %s16, 0
    %p105 = por %p103, %p104
    %p106 = scmp.ne.s32.totalorder %s94, %s95
    %p107 = scmp.eq.s32.totalorder %s17, 1
    %p108 = por %p106, %p107
    %p110 = scmp.ne.s32.totalorder %s95, %s109
    %p111 = scmp.eq.s32.totalorder %s17, 0
    %p112 = por %p110, %p111
    %s114 = sadd.s32 %s113, 1
    %p117 = scmp.eq.s32.totalorder %s11, 1
    %p118 = scmp.ne.s32.totalorder %s113, %s115
    %p119 = scmp.eq.s32.totalorder %s11, 0
    %p120 = por %p118, %p119
    %p121 = scmp.ne.s32.totalorder %s113, %s115
    %p122 = scmp.eq.s32.totalorder %s16, 1
    %p123 = por %p121, %p122
    %p124 = scmp.ne.s32.totalorder %s115, %s116
    %p125 = scmp.eq.s32.totalorder %s16, 0
    %p126 = por %p124, %p125
    %p127 = scmp.ne.s32.totalorder %s115, %s116
    %p128 = scmp.eq.s32.totalorder %s17, 1
    %p129 = por %p127, %p128
    %p131 = scmp.ne.s32.totalorder %s116, %s130
    %p132 = scmp.eq.s32.totalorder %s17, 0
    %p133 = por %p131, %p132
    %s134 = ssub.s32 %s11, %s18
    %p135 = scmp.eq.s32.totalorder %s134, 0
    %s137 = sadd.s32 %s136, 1
    %s138 = scalar_select %p135, %s136, %s137
    %p141 = pneg %p135
    %p142 = scmp.eq.s32.totalorder %s11, 1
    %p143 = por %p141, %p142
    %p144 = scmp.ne.s32.totalorder %s136, %s139
    %p145 = scmp.eq.s32.totalorder %s11, 0
    %p146 = por %p144, %p145
    %p147 = scmp.ne.s32.totalorder %s136, %s139
    %p148 = scmp.eq.s32.totalorder %s16, 1
    %p149 = por %p147, %p148
    %p150 = scmp.ne.s32.totalorder %s139, %s140
    %p151 = scmp.eq.s32.totalorder %s16, 0
    %p152 = por %p150, %p151
    %p153 = scmp.ne.s32.totalorder %s139, %s140
    %p154 = scmp.eq.s32.totalorder %s17, 1
    %p155 = por %p153, %p154
    %p157 = scmp.ne.s32.totalorder %s140, %s156
    %p158 = scmp.eq.s32.totalorder %s17, 0
    %p159 = por %p157, %p158
    %p160 = scmp.le.s32.totalorder 1, %s11
    %p161 = scmp.lt.s32.totalorder %s11, 3
    %p162 = pnand %p160, %p161
    %p163 = pneg %p162
    // Predicated region
    $region9: #{bottleneck_forward.3} parent=5 // pred_check
      _
    $region10: #{bottleneck_forward.3} parent=5 // pred_check_branch
      %165 = sbr.rel (%p162) target = $region12
    $region11: #{bottleneck_forward.3} parent=5 // pred_region
      %s166 = ssub.s32 %s11, 1
      // Predicated region
      $region13: #{bottleneck_forward.3} parent=11 // pred_check
        %p167 = pneg %p84
      $region14: #{bottleneck_forward.3} parent=11 // pred_check_branch
        %169 = sbr.rel (%p167) target = $region16
      $region15: #{bottleneck_forward.3} parent=11 // pred_region
        _
      $region16: #{bottleneck_forward.3} parent=11 // pred_fallthru
        _
      // Predicated region
      $region17: #{bottleneck_forward.3} parent=11 // pred_check
        %p170 = pneg %p105
      $region18: #{bottleneck_forward.3} parent=11 // pred_check_branch
        %172 = sbr.rel (%p170) target = $region20
      $region19: #{bottleneck_forward.3} parent=11 // pred_region
        _
      $region20: #{bottleneck_forward.3} parent=11 // pred_fallthru
        _
      // Predicated region
      $region21: #{bottleneck_forward.3} parent=11 // pred_check
        %p173 = pneg %p126
      $region22: #{bottleneck_forward.3} parent=11 // pred_check_branch
        %175 = sbr.rel (%p173) target = $region24
      $region23: #{bottleneck_forward.3} parent=11 // pred_region
        _
      $region24: #{bottleneck_forward.3} parent=11 // pred_fallthru
        _
    $region12: #{bottleneck_forward.3} parent=5 // pred_fallthru
      _
    %p176 = scmp.lt.s32.totalorder %s11, 2
    // Predicated region
    $region25: #{bottleneck_forward.3} parent=5 // pred_check
      %p177 = pneg %p176
    $region26: #{bottleneck_forward.3} parent=5 // pred_check_branch
      %179 = sbr.rel (%p177) target = $region28
    $region27: #{bottleneck_forward.3} parent=5 // pred_region
      // Predicated region
      $region29: #{bottleneck_forward.3} parent=27 // pred_check
        %p180 = pneg %p31
      $region30: #{bottleneck_forward.3} parent=27 // pred_check_branch
        %182 = sbr.rel (%p180) target = $region32
      $region31: #{bottleneck_forward.3} parent=27 // pred_region
        %p183 = scmp.lt.s32.totalorder %s11, 1
        %s184 = scalar_select %p183, %s11, 1
        %s185 = smul.addr %s184, 8
        %s186 = smul.addr %s185, 8
        %s187 = scalar_lea.vmem %s0, %s186
      $region32: #{bottleneck_forward.3} parent=27 // pred_fallthru
        _
      // Predicated region
      $region33: #{bottleneck_forward.3} parent=27 // pred_check
        %p188 = pneg %p57
      $region34: #{bottleneck_forward.3} parent=27 // pred_check_branch
        %190 = sbr.rel (%p188) target = $region36
      $region35: #{bottleneck_forward.3} parent=27 // pred_region
        %p191 = scmp.lt.s32.totalorder %s11, 1
        %s192 = scalar_select %p191, %s11, 1
        %s193 = smul.addr %s192, 2
        %s194 = smul.addr %s193, 4
        %s195 = scalar_lea.vmem %s1, %s194
      $region36: #{bottleneck_forward.3} parent=27 // pred_fallthru
        _
    $region28: #{bottleneck_forward.3} parent=5 // pred_fallthru
      _
    %p196 = scmp.le.s32.totalorder 1, %s11
    %p197 = scmp.lt.s32.totalorder %s11, 3
    %p198 = pnand %p196, %p197
    %p199 = pneg %p198
    // Predicated region
    $region37: #{bottleneck_forward.3} parent=5 // pred_check
      _
    $region38: #{bottleneck_forward.3} parent=5 // pred_check_branch
      %201 = sbr.rel (%p198) target = $region40
    $region39: #{bottleneck_forward.3} parent=5 // pred_region
      %s202 = ssub.s32 %s11, 1
      %p203 = scmp.lt.s32.totalorder %s16, 1
      %s204 = scalar_select %p203, %s16, 1
      %s205 = smul.addr %s204, 8
      %s206 = smul.addr %s205, 8
      %s207 = scalar_lea.vmem %s0, %s206
      %p208 = pneg %p37
      %p209 = pneg %p34
      %p210 = scmp.lt.s32.totalorder %s16, 1
      %s211 = scalar_select %p210, %s16, 1
      %s212 = smul.addr %s211, 2
      %s213 = smul.addr %s212, 4
      %s214 = scalar_lea.vmem %s1, %s213
      %p215 = pneg %p63
      %p216 = pneg %p60
      %p217 = pneg %p84
      %p218 = pneg %p81
      %p219 = pneg %p105
      %p220 = pneg %p102
      %p221 = pneg %p126
      %p222 = pneg %p123
      %p223 = pneg %p152
      %p224 = pneg %p149
      %p225 = scmp.lt.s32.totalorder %s16, 1
      %s226 = scalar_select %p225, %s16, 1
      %s227 = smul.addr %s226, 4
      %s228 = smul.addr %s227, 8
      %s229 = scalar_lea.vmem %s5, %s228
      %p230 = scmp.lt.s32.totalorder %s16, 1
      %s231 = scalar_select %p230, %s16, 1
      %s232 = smul.addr %s231, 8
      %s233 = smul.addr %s232, 8
      %s234 = scalar_lea.vmem %s0, %s233
      %p235 = scmp.lt.s32.totalorder %s16, 1
      %s236 = scalar_select %p235, %s16, 1
      %s237 = smul.addr %s236, 2
      %s238 = smul.addr %s237, 4
      %s239 = scalar_lea.vmem %s1, %s238
      %p240 = scmp.lt.s32.totalorder %s16, 1
      %s241 = scalar_select %p240, %s16, 1
      %s242 = smul.addr %s241, 4
      %s243 = smul.addr %s242, 8
      %s244 = scalar_lea.vmem %s5, %s243
      %v246 = vld [vmem:[%s234] sm:$0xff]
      %v247 = vld [vmem:[%s234 + $0x8] sm:$0xff]
      %v248 = vld [vmem:[%s234 + $0x10] sm:$0xff]
      %v249 = vld [vmem:[%s234 + $0x18] sm:$0xff]
      %v250 = vld [vmem:[%s234 + $0x20] sm:$0xff]
      %v251 = vld [vmem:[%s234 + $0x28] sm:$0xff]
      %v252 = vld [vmem:[%s234 + $0x30] sm:$0xff]
      %v253 = vld [vmem:[%s234 + $0x38] sm:$0xff]
      %v254 = vld [vmem:[%s2] sm:$0xff]
      %v255 = vld [vmem:[%s2 + $0x8] sm:$0xff]
      %v256 = vld [vmem:[%s2 + $0x10] sm:$0xff]
      %v257 = vld [vmem:[%s2 + $0x18] sm:$0xff]
      %259 = vset.pattern.permute.xlu0 0
      %260 = vperm.xlu0 %259, %v254
      %v261 = vpop.permute.xlu0 %260
      %264 = vset.pattern.permute.xlu0 0
      %265 = vperm.xlu0 %264, %v255
      %v266 = vpop.permute.xlu0 %265
      %269 = vset.pattern.permute.xlu0 0
      %270 = vperm.xlu0 %269, %v256
      %v271 = vpop.permute.xlu0 %270
      %274 = vset.pattern.permute.xlu0 0
      %275 = vperm.xlu0 %274, %v257
      %v276 = vpop.permute.xlu0 %275
      %v278 = vmul.f32 %v246, %v261
      %v279 = vmul.f32 %v247, %v261
      %v280 = vmul.f32 %v248, %v266
      %v281 = vmul.f32 %v249, %v266
      %v282 = vmul.f32 %v250, %v271
      %v283 = vmul.f32 %v251, %v271
      %v284 = vmul.f32 %v252, %v276
      %v285 = vmul.f32 %v253, %v276
      %v286 = vld [vmem:[%s3] sm:$0xff]
      %v287 = vld [vmem:[%s3 + $0x8] sm:$0xff]
      %v288 = vld [vmem:[%s3 + $0x10] sm:$0xff]
      %v289 = vld [vmem:[%s3 + $0x18] sm:$0xff]
      %291 = vset.pattern.permute.xlu0 0
      %292 = vperm.xlu0 %291, %v286
      %v293 = vpop.permute.xlu0 %292
      %296 = vset.pattern.permute.xlu0 0
      %297 = vperm.xlu0 %296, %v287
      %v298 = vpop.permute.xlu0 %297
      %301 = vset.pattern.permute.xlu0 0
      %302 = vperm.xlu0 %301, %v288
      %v303 = vpop.permute.xlu0 %302
      %306 = vset.pattern.permute.xlu0 0
      %307 = vperm.xlu0 %306, %v289
      %v308 = vpop.permute.xlu0 %307
      %v310 = vadd.f32 %v278, %v293
      %v311 = vadd.f32 %v279, %v293
      %v312 = vadd.f32 %v280, %v298
      %v313 = vadd.f32 %v281, %v298
      %v314 = vadd.f32 %v282, %v303
      %v315 = vadd.f32 %v283, %v303
      %v316 = vadd.f32 %v284, %v308
      %v317 = vadd.f32 %v285, %v308
      %v318 = vmax.f32 %v310, 0.0
      %v319 = vmax.f32 %v311, 0.0
      %v320 = vmax.f32 %v312, 0.0
      %v321 = vmax.f32 %v313, 0.0
      %v322 = vmax.f32 %v314, 0.0
      %v323 = vmax.f32 %v315, 0.0
      %v324 = vmax.f32 %v316, 0.0
      %v325 = vmax.f32 %v317, 0.0
      %334 = vrot.lane.b32.xlu0 %v318, 17
      %v335 = vpop.permute.xlu0 %334
      %336 = vrot.lane.b32.xlu0 %v319, 17
      %v337 = vpop.permute.xlu0 %336
      %338 = vrot.lane.b32.xlu0 %v320, 17
      %v339 = vpop.permute.xlu0 %338
      %340 = vrot.lane.b32.xlu0 %v321, 17
      %v341 = vpop.permute.xlu0 %340
      %342 = vrot.lane.b32.xlu0 %v322, 17
      %v343 = vpop.permute.xlu0 %342
      %344 = vrot.lane.b32.xlu0 %v323, 17
      %v345 = vpop.permute.xlu0 %344
      %346 = vrot.lane.b32.xlu0 %v324, 17
      %v347 = vpop.permute.xlu0 %346
      %348 = vrot.lane.b32.xlu0 %v325, 17
      %v349 = vpop.permute.xlu0 %348
      %vm350 = vcmask 138240
      %v351 = vsel %vm350, %v335, %v337
      %v352 = vsel %vm350, %v339, %v341
      %v353 = vsel %vm350, %v343, %v345
      %v354 = vsel %vm350, %v347, %v349
      %v367 = vsel %vm350, 0.0, %v335
      %v368 = vsel %vm350, 0.0, %v339
      %v369 = vsel %vm350, 0.0, %v343
      %v370 = vsel %vm350, 0.0, %v347
      %v371 = vsel %vm350, %v337, 0.0
      %v372 = vsel %vm350, %v341, 0.0
      %v373 = vsel %vm350, %v345, 0.0
      %v374 = vsel %vm350, %v349, 0.0
      %v375 = vlaneseq
      %v376 = vand.u32 %v375, 127
      %v377 = vadd.s32 %v376, 128
      %vm378 = vcmp.lt.s32.totalorder %v376, 0
      %v379 = vsub.s32 0, %v376
      %v380 = vsel %vm378, %v379, %v376
      %v381 = vshrl.u32 %v380, 4
      %v382 = vand.u32 %v380, 15
      %v383 = vsub.s32 0, %v382
      %v384 = vsel %vm378, %v383, %v382
      %vm385 = vcmp.lt.s32.totalorder %v377, 0
      %v386 = vsub.s32 0, %v377
      %v387 = vsel %vm385, %v386, %v377
      %v388 = vshrl.u32 %v387, 4
      %v389 = vand.u32 %v387, 15
      %v390 = vsub.s32 0, %v389
      %v391 = vsel %vm385, %v390, %v389
      %vm392 = vcmp.ne.s32.totalorder %v384, 0
      %vm393 = vcmp.ne.s32.totalorder %v391, 0
      %vm394 = vcmp.lt.s32.totalorder %v384, 0
      %vm395 = vcmp.lt.s32.totalorder %v391, 0
      %vm396 = vmand %vm394, %vm392
      %vm397 = vmand %vm395, %vm393
      %v398 = vadd.s32 %v384, 16
      %v399 = vadd.s32 %v391, 16
      %v400 = vsel %vm396, %v398, %v384
      %v401 = vsel %vm397, %v399, %v391
      %v402 = vld [vmem:[%s4] sm:$0xff]
      %v403 = vld [vmem:[%s4 + $0x8] sm:$0xff]
      %v404 = vld [vmem:[%s4 + $0x10] sm:$0xff]
      %v405 = vpack.c.bf16 %v402, %v402
      %v406 = vpack.c.bf16 %v403, %v403
      %v407 = vpack.c.bf16 %v404, %v404
      %vm408 = vcmp.ge.s32.totalorder %v400, 1
      %vm409 = vcmp.ge.s32.totalorder %v401, 1
      %v410 = vsel %vm408, 1, 0
      %v411 = vsel %vm409, 1, 0
      %vm412 = vcmp.eq.s32.totalorder %v410, 1
      %vm413 = vcmp.eq.s32.totalorder %v411, 1
      %v414 = vsel %vm412, %v367, 0.0
      %v415 = vsel %vm413, %v351, 0.0
      %v416 = vsel %vm412, %v368, 0.0
      %v417 = vsel %vm413, %v352, 0.0
      %v418 = vsel %vm412, %v369, 0.0
      %v419 = vsel %vm413, %v353, 0.0
      %v420 = vsel %vm412, %v370, 0.0
      %v421 = vsel %vm413, %v354, 0.0
      %vm422 = vcmp.le.s32.totalorder %v400, 14
      %vm423 = vcmp.le.s32.totalorder %v401, 14
      %v424 = vsel %vm422, 1, 0
      %v425 = vsel %vm423, 1, 0
      %vm426 = vcmp.eq.s32.totalorder %v424, 1
      %vm427 = vcmp.eq.s32.totalorder %v425, 1
      %436 = vrot.lane.b32.xlu0 %v367, 126
      %v437 = vpop.permute.xlu0 %436
      %438 = vrot.lane.b32.xlu0 %v351, 126
      %v439 = vpop.permute.xlu0 %438
      %440 = vrot.lane.b32.xlu0 %v371, 126
      %v441 = vpop.permute.xlu0 %440
      %442 = vrot.lane.b32.xlu0 %v368, 126
      %v443 = vpop.permute.xlu0 %442
      %444 = vrot.lane.b32.xlu0 %v352, 126
      %v445 = vpop.permute.xlu0 %444
      %446 = vrot.lane.b32.xlu0 %v372, 126
      %v447 = vpop.permute.xlu0 %446
      %448 = vrot.lane.b32.xlu0 %v369, 126
      %v449 = vpop.permute.xlu0 %448
      %450 = vrot.lane.b32.xlu0 %v353, 126
      %v451 = vpop.permute.xlu0 %450
      %452 = vrot.lane.b32.xlu0 %v373, 126
      %v453 = vpop.permute.xlu0 %452
      %454 = vrot.lane.b32.xlu0 %v370, 126
      %v455 = vpop.permute.xlu0 %454
      %456 = vrot.lane.b32.xlu0 %v354, 126
      %v457 = vpop.permute.xlu0 %456
      %458 = vrot.lane.b32.xlu0 %v374, 126
      %v459 = vpop.permute.xlu0 %458
      %vm460 = vcmask 1031168
      %v461 = vsel %vm460, %v437, %v439
      %v462 = vsel %vm460, %v439, %v441
      %v463 = vsel %vm460, %v443, %v445
      %v464 = vsel %vm460, %v445, %v447
      %v465 = vsel %vm460, %v449, %v451
      %v466 = vsel %vm460, %v451, %v453
      %v467 = vsel %vm460, %v455, %v457
      %v468 = vsel %vm460, %v457, %v459
      %v477 = vsel %vm426, %v461, 0.0
      %v478 = vsel %vm427, %v462, 0.0
      %v479 = vsel %vm426, %v463, 0.0
      %v480 = vsel %vm427, %v464, 0.0
      %v481 = vsel %vm426, %v465, 0.0
      %v482 = vsel %vm427, %v466, 0.0
      %v483 = vsel %vm426, %v467, 0.0
      %v484 = vsel %vm427, %v468, 0.0
      %485 = vrot.lane.b32.xlu0 %v367, 127
      %v486 = vpop.permute.xlu0 %485
      %487 = vrot.lane.b32.xlu0 %v351, 127
      %v488 = vpop.permute.xlu0 %487
      %489 = vrot.lane.b32.xlu0 %v371, 127
      %v490 = vpop.permute.xlu0 %489
      %491 = vrot.lane.b32.xlu0 %v368, 127
      %v492 = vpop.permute.xlu0 %491
      %493 = vrot.lane.b32.xlu0 %v352, 127
      %v494 = vpop.permute.xlu0 %493
      %495 = vrot.lane.b32.xlu0 %v372, 127
      %v496 = vpop.permute.xlu0 %495
      %497 = vrot.lane.b32.xlu0 %v369, 127
      %v498 = vpop.permute.xlu0 %497
      %499 = vrot.lane.b32.xlu0 %v353, 127
      %v500 = vpop.permute.xlu0 %499
      %501 = vrot.lane.b32.xlu0 %v373, 127
      %v502 = vpop.permute.xlu0 %501
      %503 = vrot.lane.b32.xlu0 %v370, 127
      %v504 = vpop.permute.xlu0 %503
      %505 = vrot.lane.b32.xlu0 %v354, 127
      %v506 = vpop.permute.xlu0 %505
      %507 = vrot.lane.b32.xlu0 %v374, 127
      %v508 = vpop.permute.xlu0 %507
      %vm509 = vcmask 1039360
      %v510 = vsel %vm509, %v486, %v488
      %v511 = vsel %vm509, %v488, %v490
      %v512 = vsel %vm509, %v492, %v494
      %v513 = vsel %vm509, %v494, %v496
      %v514 = vsel %vm509, %v498, %v500
      %v515 = vsel %vm509, %v500, %v502
      %v516 = vsel %vm509, %v504, %v506
      %v517 = vsel %vm509, %v506, %v508
      %v526 = vpack.c.bf16 %v416, %v414
      %v527 = vpack.c.bf16 %v417, %v415
      %v528 = vpack.c.bf16 %v420, %v418
      %v529 = vpack.c.bf16 %v421, %v419
      %v530 = vpack.c.bf16 %v512, %v510
      %v531 = vpack.c.bf16 %v513, %v511
      %v532 = vpack.c.bf16 %v516, %v514
      %v533 = vpack.c.bf16 %v517, %v515
      %v534 = vpack.c.bf16 %v479, %v477
      %v535 = vpack.c.bf16 %v480, %v478
      %v536 = vpack.c.bf16 %v483, %v481
      %v537 = vpack.c.bf16 %v484, %v482
      %538 = vrot.lane.b32.xlu0 %v367, 112
      %v539 = vpop.permute.xlu0 %538
      %540 = vrot.lane.b32.xlu0 %v351, 112
      %v541 = vpop.permute.xlu0 %540
      %542 = vrot.lane.b32.xlu0 %v371, 112
      %v543 = vpop.permute.xlu0 %542
      %544 = vrot.lane.b32.xlu0 %v368, 112
      %v545 = vpop.permute.xlu0 %544
      %546 = vrot.lane.b32.xlu0 %v352, 112
      %v547 = vpop.permute.xlu0 %546
      %548 = vrot.lane.b32.xlu0 %v372, 112
      %v549 = vpop.permute.xlu0 %548
      %550 = vrot.lane.b32.xlu0 %v369, 112
      %v551 = vpop.permute.xlu0 %550
      %552 = vrot.lane.b32.xlu0 %v353, 112
      %v553 = vpop.permute.xlu0 %552
      %554 = vrot.lane.b32.xlu0 %v373, 112
      %v555 = vpop.permute.xlu0 %554
      %556 = vrot.lane.b32.xlu0 %v370, 112
      %v557 = vpop.permute.xlu0 %556
      %558 = vrot.lane.b32.xlu0 %v354, 112
      %v559 = vpop.permute.xlu0 %558
      %560 = vrot.lane.b32.xlu0 %v374, 112
      %v561 = vpop.permute.xlu0 %560
      %vm562 = vcmask 916480
      %v563 = vsel %vm562, %v539, %v541
      %v564 = vsel %vm562, %v541, %v543
      %v565 = vsel %vm562, %v545, %v547
      %v566 = vsel %vm562, %v547, %v549
      %v567 = vsel %vm562, %v551, %v553
      %v568 = vsel %vm562, %v553, %v555
      %v569 = vsel %vm562, %v557, %v559
      %v570 = vsel %vm562, %v559, %v561
      %v579 = vsel %vm412, %v563, 0.0
      %v580 = vsel %vm413, %v564, 0.0
      %v581 = vsel %vm412, %v565, 0.0
      %v582 = vsel %vm413, %v566, 0.0
      %v583 = vsel %vm412, %v567, 0.0
      %v584 = vsel %vm413, %v568, 0.0
      %v585 = vsel %vm412, %v569, 0.0
      %v586 = vsel %vm413, %v570, 0.0
      %587 = vrot.lane.b32.xlu0 %v367, 110
      %v588 = vpop.permute.xlu0 %587
      %589 = vrot.lane.b32.xlu0 %v351, 110
      %v590 = vpop.permute.xlu0 %589
      %591 = vrot.lane.b32.xlu0 %v371, 110
      %v592 = vpop.permute.xlu0 %591
      %593 = vrot.lane.b32.xlu0 %v368, 110
      %v594 = vpop.permute.xlu0 %593
      %595 = vrot.lane.b32.xlu0 %v352, 110
      %v596 = vpop.permute.xlu0 %595
      %597 = vrot.lane.b32.xlu0 %v372, 110
      %v598 = vpop.permute.xlu0 %597
      %599 = vrot.lane.b32.xlu0 %v369, 110
      %v600 = vpop.permute.xlu0 %599
      %601 = vrot.lane.b32.xlu0 %v353, 110
      %v602 = vpop.permute.xlu0 %601
      %603 = vrot.lane.b32.xlu0 %v373, 110
      %v604 = vpop.permute.xlu0 %603
      %605 = vrot.lane.b32.xlu0 %v370, 110
      %v606 = vpop.permute.xlu0 %605
      %607 = vrot.lane.b32.xlu0 %v354, 110
      %v608 = vpop.permute.xlu0 %607
      %609 = vrot.lane.b32.xlu0 %v374, 110
      %v610 = vpop.permute.xlu0 %609
      %vm611 = vcmask 900096
      %v612 = vsel %vm611, %v588, %v590
      %v613 = vsel %vm611, %v590, %v592
      %v614 = vsel %vm611, %v594, %v596
      %v615 = vsel %vm611, %v596, %v598
      %v616 = vsel %vm611, %v600, %v602
      %v617 = vsel %vm611, %v602, %v604
      %v618 = vsel %vm611, %v606, %v608
      %v619 = vsel %vm611, %v608, %v610
      %v628 = vsel %vm426, %v612, 0.0
      %v629 = vsel %vm427, %v613, 0.0
      %v630 = vsel %vm426, %v614, 0.0
      %v631 = vsel %vm427, %v615, 0.0
      %v632 = vsel %vm426, %v616, 0.0
      %v633 = vsel %vm427, %v617, 0.0
      %v634 = vsel %vm426, %v618, 0.0
      %v635 = vsel %vm427, %v619, 0.0
      %636 = vrot.lane.b32.xlu0 %v367, 111
      %v637 = vpop.permute.xlu0 %636
      %638 = vrot.lane.b32.xlu0 %v351, 111
      %v639 = vpop.permute.xlu0 %638
      %640 = vrot.lane.b32.xlu0 %v371, 111
      %v641 = vpop.permute.xlu0 %640
      %642 = vrot.lane.b32.xlu0 %v368, 111
      %v643 = vpop.permute.xlu0 %642
      %644 = vrot.lane.b32.xlu0 %v352, 111
      %v645 = vpop.permute.xlu0 %644
      %646 = vrot.lane.b32.xlu0 %v372, 111
      %v647 = vpop.permute.xlu0 %646
      %648 = vrot.lane.b32.xlu0 %v369, 111
      %v649 = vpop.permute.xlu0 %648
      %650 = vrot.lane.b32.xlu0 %v353, 111
      %v651 = vpop.permute.xlu0 %650
      %652 = vrot.lane.b32.xlu0 %v373, 111
      %v653 = vpop.permute.xlu0 %652
      %654 = vrot.lane.b32.xlu0 %v370, 111
      %v655 = vpop.permute.xlu0 %654
      %656 = vrot.lane.b32.xlu0 %v354, 111
      %v657 = vpop.permute.xlu0 %656
      %658 = vrot.lane.b32.xlu0 %v374, 111
      %v659 = vpop.permute.xlu0 %658
      %vm660 = vcmask 908288
      %v661 = vsel %vm660, %v637, %v639
      %v662 = vsel %vm660, %v639, %v641
      %v663 = vsel %vm660, %v643, %v645
      %v664 = vsel %vm660, %v645, %v647
      %v665 = vsel %vm660, %v649, %v651
      %v666 = vsel %vm660, %v651, %v653
      %v667 = vsel %vm660, %v655, %v657
      %v668 = vsel %vm660, %v657, %v659
      %v677 = vpack.c.bf16 %v581, %v579
      %v678 = vpack.c.bf16 %v582, %v580
      %v679 = vpack.c.bf16 %v585, %v583
      %v680 = vpack.c.bf16 %v586, %v584
      %v681 = vpack.c.bf16 %v663, %v661
      %v682 = vpack.c.bf16 %v664, %v662
      %v683 = vpack.c.bf16 %v667, %v665
      %v684 = vpack.c.bf16 %v668, %v666
      %v685 = vpack.c.bf16 %v630, %v628
      %v686 = vpack.c.bf16 %v631, %v629
      %v687 = vpack.c.bf16 %v634, %v632
      %v688 = vpack.c.bf16 %v635, %v633
      %vm689 = vcmask 785408
      %v691 = vsel %vm689, %v406, 0
      %693 = vmatprep.subr.bf16.mxu0 %v678
      %694 = vmatpush1.bf16.msra.mxu0 %v677
      %695 = vmatprep.subr.bf16.mxu0 %v680
      %696 = vmatpush1.bf16.msra.mxu0 %v679
      %697 = vmatprep.subr.bf16.mxu0 %v682
      %698 = vmatpush1.bf16.msra.mxu0 %v681
      %699 = vmatprep.subr.bf16.mxu0 %v684
      %700 = vmatpush1.bf16.msra.mxu0 %v683
      %701 = vmatprep.subr.bf16.mxu0 %v686
      %702 = vmatpush1.bf16.msra.mxu0 %v685
      %703 = vmatprep.subr.bf16.mxu0 %v688
      %704 = vmatpush1.bf16.msra.mxu0 %v687
      %705 = vmatprep.subr.bf16.mxu0 0
      %706 = vmatpush1.bf16.msra.mxu0 0
      %707 = vmatprep.subr.bf16.mxu0 0
      %708 = vmatpush1.bf16.msra.mxu0 0
      %709 = vmatprep.subr.bf16.mxu0 0
      %710 = vmatpush1.bf16.msra.mxu0 0
      %711 = vmatprep.subr.bf16.mxu0 0
      %712 = vmatpush1.bf16.msra.mxu0 0
      %713 = vmatprep.subr.bf16.mxu0 0
      %714 = vmatpush1.bf16.msra.mxu0 0
      %715 = vmatprep.subr.bf16.mxu0 0
      %716 = vmatpush1.bf16.msra.mxu0 0
      %717 = vmatprep.subr.bf16.mxu0 0
      %718 = vmatpush1.bf16.msra.mxu0 0
      %719 = vmatprep.subr.bf16.mxu0 0
      %720 = vmatpush1.bf16.msra.mxu0 0
      %721 = vmatprep.subr.bf16.mxu0 0
      %722 = vmatpush1.bf16.msra.mxu0 0
      %723 = vmatprep.subr.bf16.mxu0 0
      %724 = vmatpush1.bf16.msra.mxu0 0
      %725 = vmatprep.mubr.bf16.mxu0 0
      %726 = vmatmul.mubr.bf16.gmra.mrb[0].mxu0 %v691
      %v727 = vpop.f32.mrb[0].mxu0
      %v728 = vadd.f32 0.0, %v727
      %v729 = vpop.f32.mrb[0].mxu0
      %v730 = vadd.f32 0.0, %v729
      %v731 = vpop.f32.mrb[0].mxu0
      %v732 = vpop.f32.mrb[0].mxu0
      %733 = vdwg.mxu0
      %v735 = vsel %vm689, %v405, 0
      %737 = vmatprep.subr.bf16.mxu0 %v527
      %738 = vmatpush1.bf16.msra.mxu0 %v526
      %739 = vmatprep.subr.bf16.mxu0 %v529
      %740 = vmatpush1.bf16.msra.mxu0 %v528
      %741 = vmatprep.subr.bf16.mxu0 %v531
      %742 = vmatpush1.bf16.msra.mxu0 %v530
      %743 = vmatprep.subr.bf16.mxu0 %v533
      %744 = vmatpush1.bf16.msra.mxu0 %v532
      %745 = vmatprep.subr.bf16.mxu0 %v535
      %746 = vmatpush1.bf16.msra.mxu0 %v534
      %747 = vmatprep.subr.bf16.mxu0 %v537
      %748 = vmatpush1.bf16.msra.mxu0 %v536
      %749 = vmatprep.subr.bf16.mxu0 0
      %750 = vmatpush1.bf16.msra.mxu0 0
      %751 = vmatprep.subr.bf16.mxu0 0
      %752 = vmatpush1.bf16.msra.mxu0 0
      %753 = vmatprep.subr.bf16.mxu0 0
      %754 = vmatpush1.bf16.msra.mxu0 0
      %755 = vmatprep.subr.bf16.mxu0 0
      %756 = vmatpush1.bf16.msra.mxu0 0
      %757 = vmatprep.subr.bf16.mxu0 0
      %758 = vmatpush1.bf16.msra.mxu0 0
      %759 = vmatprep.subr.bf16.mxu0 0
      %760 = vmatpush1.bf16.msra.mxu0 0
      %761 = vmatprep.subr.bf16.mxu0 0
      %762 = vmatpush1.bf16.msra.mxu0 0
      %763 = vmatprep.subr.bf16.mxu0 0
      %764 = vmatpush1.bf16.msra.mxu0 0
      %765 = vmatprep.subr.bf16.mxu0 0
      %766 = vmatpush1.bf16.msra.mxu0 0
      %767 = vmatprep.subr.bf16.mxu0 0
      %768 = vmatpush1.bf16.msra.mxu0 0
      %769 = vmatprep.mubr.bf16.mxu0 0
      %770 = vmatmul.mubr.bf16.gmra.mrb[0].mxu0 %v735
      %v771 = vpop.f32.mrb[0].mxu0
      %v772 = vadd.f32 %v728, %v771
      %v773 = vpop.f32.mrb[0].mxu0
      %v774 = vadd.f32 %v730, %v773
      %v775 = vpop.f32.mrb[0].mxu0
      %v776 = vpop.f32.mrb[0].mxu0
      %777 = vdwg.mxu0
      %778 = vrot.lane.b32.xlu0 %v367, 96
      %v779 = vpop.permute.xlu0 %778
      %780 = vrot.lane.b32.xlu0 %v351, 96
      %v781 = vpop.permute.xlu0 %780
      %782 = vrot.lane.b32.xlu0 %v371, 96
      %v783 = vpop.permute.xlu0 %782
      %784 = vrot.lane.b32.xlu0 %v368, 96
      %v785 = vpop.permute.xlu0 %784
      %786 = vrot.lane.b32.xlu0 %v352, 96
      %v787 = vpop.permute.xlu0 %786
      %788 = vrot.lane.b32.xlu0 %v372, 96
      %v789 = vpop.permute.xlu0 %788
      %790 = vrot.lane.b32.xlu0 %v369, 96
      %v791 = vpop.permute.xlu0 %790
      %792 = vrot.lane.b32.xlu0 %v353, 96
      %v793 = vpop.permute.xlu0 %792
      %794 = vrot.lane.b32.xlu0 %v373, 96
      %v795 = vpop.permute.xlu0 %794
      %796 = vrot.lane.b32.xlu0 %v370, 96
      %v797 = vpop.permute.xlu0 %796
      %798 = vrot.lane.b32.xlu0 %v354, 96
      %v799 = vpop.permute.xlu0 %798
      %800 = vrot.lane.b32.xlu0 %v374, 96
      %v801 = vpop.permute.xlu0 %800
      %v802 = vsel %vm689, %v779, %v781
      %v803 = vsel %vm689, %v781, %v783
      %v804 = vsel %vm689, %v785, %v787
      %v805 = vsel %vm689, %v787, %v789
      %v806 = vsel %vm689, %v791, %v793
      %v807 = vsel %vm689, %v793, %v795
      %v808 = vsel %vm689, %v797, %v799
      %v809 = vsel %vm689, %v799, %v801
      %v818 = vsel %vm412, %v802, 0.0
      %v819 = vsel %vm413, %v803, 0.0
      %v820 = vsel %vm412, %v804, 0.0
      %v821 = vsel %vm413, %v805, 0.0
      %v822 = vsel %vm412, %v806, 0.0
      %v823 = vsel %vm413, %v807, 0.0
      %v824 = vsel %vm412, %v808, 0.0
      %v825 = vsel %vm413, %v809, 0.0
      %826 = vrot.lane.b32.xlu0 %v367, 94
      %v827 = vpop.permute.xlu0 %826
      %828 = vrot.lane.b32.xlu0 %v351, 94
      %v829 = vpop.permute.xlu0 %828
      %830 = vrot.lane.b32.xlu0 %v371, 94
      %v831 = vpop.permute.xlu0 %830
      %832 = vrot.lane.b32.xlu0 %v368, 94
      %v833 = vpop.permute.xlu0 %832
      %834 = vrot.lane.b32.xlu0 %v352, 94
      %v835 = vpop.permute.xlu0 %834
      %836 = vrot.lane.b32.xlu0 %v372, 94
      %v837 = vpop.permute.xlu0 %836
      %838 = vrot.lane.b32.xlu0 %v369, 94
      %v839 = vpop.permute.xlu0 %838
      %840 = vrot.lane.b32.xlu0 %v353, 94
      %v841 = vpop.permute.xlu0 %840
      %842 = vrot.lane.b32.xlu0 %v373, 94
      %v843 = vpop.permute.xlu0 %842
      %844 = vrot.lane.b32.xlu0 %v370, 94
      %v845 = vpop.permute.xlu0 %844
      %846 = vrot.lane.b32.xlu0 %v354, 94
      %v847 = vpop.permute.xlu0 %846
      %848 = vrot.lane.b32.xlu0 %v374, 94
      %v849 = vpop.permute.xlu0 %848
      %vm850 = vcmask 769024
      %v851 = vsel %vm850, %v827, %v829
      %v852 = vsel %vm850, %v829, %v831
      %v853 = vsel %vm850, %v833, %v835
      %v854 = vsel %vm850, %v835, %v837
      %v855 = vsel %vm850, %v839, %v841
      %v856 = vsel %vm850, %v841, %v843
      %v857 = vsel %vm850, %v845, %v847
      %v858 = vsel %vm850, %v847, %v849
      %v867 = vsel %vm426, %v851, 0.0
      %v868 = vsel %vm427, %v852, 0.0
      %v869 = vsel %vm426, %v853, 0.0
      %v870 = vsel %vm427, %v854, 0.0
      %v871 = vsel %vm426, %v855, 0.0
      %v872 = vsel %vm427, %v856, 0.0
      %v873 = vsel %vm426, %v857, 0.0
      %v874 = vsel %vm427, %v858, 0.0
      %875 = vrot.lane.b32.xlu0 %v367, 95
      %v876 = vpop.permute.xlu0 %875
      %877 = vrot.lane.b32.xlu0 %v351, 95
      %v878 = vpop.permute.xlu0 %877
      %879 = vrot.lane.b32.xlu0 %v371, 95
      %v880 = vpop.permute.xlu0 %879
      %881 = vrot.lane.b32.xlu0 %v368, 95
      %v882 = vpop.permute.xlu0 %881
      %883 = vrot.lane.b32.xlu0 %v352, 95
      %v884 = vpop.permute.xlu0 %883
      %885 = vrot.lane.b32.xlu0 %v372, 95
      %v886 = vpop.permute.xlu0 %885
      %887 = vrot.lane.b32.xlu0 %v369, 95
      %v888 = vpop.permute.xlu0 %887
      %889 = vrot.lane.b32.xlu0 %v353, 95
      %v890 = vpop.permute.xlu0 %889
      %891 = vrot.lane.b32.xlu0 %v373, 95
      %v892 = vpop.permute.xlu0 %891
      %893 = vrot.lane.b32.xlu0 %v370, 95
      %v894 = vpop.permute.xlu0 %893
      %895 = vrot.lane.b32.xlu0 %v354, 95
      %v896 = vpop.permute.xlu0 %895
      %897 = vrot.lane.b32.xlu0 %v374, 95
      %v898 = vpop.permute.xlu0 %897
      %vm899 = vcmask 777216
      %v900 = vsel %vm899, %v876, %v878
      %v901 = vsel %vm899, %v878, %v880
      %v902 = vsel %vm899, %v882, %v884
      %v903 = vsel %vm899, %v884, %v886
      %v904 = vsel %vm899, %v888, %v890
      %v905 = vsel %vm899, %v890, %v892
      %v906 = vsel %vm899, %v894, %v896
      %v907 = vsel %vm899, %v896, %v898
      %v916 = vpack.c.bf16 %v820, %v818
      %v917 = vpack.c.bf16 %v821, %v819
      %v918 = vpack.c.bf16 %v824, %v822
      %v919 = vpack.c.bf16 %v825, %v823
      %v920 = vpack.c.bf16 %v902, %v900
      %v921 = vpack.c.bf16 %v903, %v901
      %v922 = vpack.c.bf16 %v906, %v904
      %v923 = vpack.c.bf16 %v907, %v905
      %v924 = vpack.c.bf16 %v869, %v867
      %v925 = vpack.c.bf16 %v870, %v868
      %v926 = vpack.c.bf16 %v873, %v871
      %v927 = vpack.c.bf16 %v874, %v872
      %v929 = vsel %vm689, %v407, 0
      %931 = vmatprep.subr.bf16.mxu0 %v917
      %932 = vmatpush1.bf16.msra.mxu0 %v916
      %933 = vmatprep.subr.bf16.mxu0 %v919
      %934 = vmatpush1.bf16.msra.mxu0 %v918
      %935 = vmatprep.subr.bf16.mxu0 %v921
      %936 = vmatpush1.bf16.msra.mxu0 %v920
      %937 = vmatprep.subr.bf16.mxu0 %v923
      %938 = vmatpush1.bf16.msra.mxu0 %v922
      %939 = vmatprep.subr.bf16.mxu0 %v925
      %940 = vmatpush1.bf16.msra.mxu0 %v924
      %941 = vmatprep.subr.bf16.mxu0 %v927
      %942 = vmatpush1.bf16.msra.mxu0 %v926
      %943 = vmatprep.subr.bf16.mxu0 0
      %944 = vmatpush1.bf16.msra.mxu0 0
      %945 = vmatprep.subr.bf16.mxu0 0
      %946 = vmatpush1.bf16.msra.mxu0 0
      %947 = vmatprep.subr.bf16.mxu0 0
      %948 = vmatpush1.bf16.msra.mxu0 0
      %949 = vmatprep.subr.bf16.mxu0 0
      %950 = vmatpush1.bf16.msra.mxu0 0
      %951 = vmatprep.subr.bf16.mxu0 0
      %952 = vmatpush1.bf16.msra.mxu0 0
      %953 = vmatprep.subr.bf16.mxu0 0
      %954 = vmatpush1.bf16.msra.mxu0 0
      %955 = vmatprep.subr.bf16.mxu0 0
      %956 = vmatpush1.bf16.msra.mxu0 0
      %957 = vmatprep.subr.bf16.mxu0 0
      %958 = vmatpush1.bf16.msra.mxu0 0
      %959 = vmatprep.subr.bf16.mxu0 0
      %960 = vmatpush1.bf16.msra.mxu0 0
      %961 = vmatprep.subr.bf16.mxu0 0
      %962 = vmatpush1.bf16.msra.mxu0 0
      %963 = vmatprep.mubr.bf16.mxu0 0
      %964 = vmatmul.mubr.bf16.gmra.mrb[0].mxu0 %v929
      %v965 = vpop.f32.mrb[0].mxu0
      %v966 = vadd.f32 0.0, %v965
      %v967 = vpop.f32.mrb[0].mxu0
      %v968 = vadd.f32 0.0, %v967
      %v969 = vpop.f32.mrb[0].mxu0
      %v970 = vpop.f32.mrb[0].mxu0
      %971 = vdwg.mxu0
      %v972 = vadd.f32 %v772, %v966
      %v973 = vadd.f32 %v774, %v968
      %974 = vst [vmem:[%s244] sm:$0xff] %v972
      %975 = vst [vmem:[%s244 + $0x8] sm:$0xff] %v973
      %v976 = vld [vmem:[%s239] sm:$0xff]
      %v978 = vcombine.high %v976, %v976
      %980 = vst [vmem:[%s244 + $0x10] sm:$0xf] %v976
      %981 = vst [vmem:[%s244 + $0x18] sm:$0xf] %v978
      %p982 = scmp.lt.s32.totalorder %s16, 1
      %s983 = scalar_select %p982, %s16, 1
      %s984 = smul.addr %s983, 4
      %s985 = smul.addr %s984, 8
      %s986 = scalar_lea.vmem %s5, %s985
      // Predicated region
      $region41: #{bottleneck_forward.3} parent=39 // pred_check
        %p987 = pneg %p149
      $region42: #{bottleneck_forward.3} parent=39 // pred_check_branch
        %989 = sbr.rel (%p987) target = $region44
      $region43: #{bottleneck_forward.3} parent=39 // pred_region
        _
      $region44: #{bottleneck_forward.3} parent=39 // pred_fallthru
        _
    $region40: #{bottleneck_forward.3} parent=5 // pred_fallthru
      _
    %p990 = scmp.le.s32.totalorder 2, %s11
    // Predicated region
    $region45: #{bottleneck_forward.3} parent=5 // pred_check
      %p991 = pneg %p990
    $region46: #{bottleneck_forward.3} parent=5 // pred_check_branch
      %993 = sbr.rel (%p991) target = $region48
    $region47: #{bottleneck_forward.3} parent=5 // pred_region
      %s994 = ssub.s32 %s11, 2
      // Predicated region
      $region49: #{bottleneck_forward.3} parent=47 // pred_check
        %p995 = pneg %p155
      $region50: #{bottleneck_forward.3} parent=47 // pred_check_branch
        %997 = sbr.rel (%p995) target = $region52
      $region51: #{bottleneck_forward.3} parent=47 // pred_region
        %p998 = scmp.lt.s32.totalorder %s17, 1
        %s999 = scalar_select %p998, %s17, 1
        %s1000 = smul.addr %s999, 4
        %s1001 = smul.addr %s1000, 8
        %s1002 = scalar_lea.vmem %s5, %s1001
      $region52: #{bottleneck_forward.3} parent=47 // pred_fallthru
        _
    $region48: #{bottleneck_forward.3} parent=5 // pred_fallthru
      _
  $region6: #{bottleneck_forward.3} parent=0 // loop_footer
    %s15 = sadd.s32 1, %s11
  $region7: #{bottleneck_forward.3} parent=0 // loop_footer_branch
    %10 = sbr.rel target = $region3
  $region8: #{bottleneck_forward.3} parent=0 // loop_exit
    _

</llo_original>
